<compile_context>
chip_gen: v6e
topology: v6e:2x2x1
jax: 0.10.0
libtpu: 0.0.40
codegen_flags: <defaults>
</compile_context>

<pallas_src>
import functools

import jax
import jax.numpy as jnp
from jax.experimental import pallas as pl
from jax.experimental.pallas import tpu as pltpu


def _gcn_rnn_kernel(x_ref, a0t_ref, a1t_ref, wm_ref, b_ref, o_ref, *,
                    gdep, alpha, beta, gamma):
    """One grid step = TN batch elements of the full gcn-RNN forward.

    x_ref   : (TN, V, C)       node features (compute dtype)
    a0t_ref : (TN, V, V)       per-batch adjacency, pre-transposed (rows = target node)
    a1t_ref : (V, V)           shared hyper adjacency, pre-transposed
    wm_ref  : (gdep+1, C, H)   MLP weight split into per-hop (C, H) blocks (in x out)
    b_ref   : (1, H)           MLP bias (f32)
    o_ref   : (TN, V, H)       output
    """
    tn, v, c = x_ref.shape
    h_dim = o_ref.shape[-1]
    cdt = x_ref.dtype

    x = x_ref[...]                                              # (TN, V, C)

    # Merge both graph convs into one matrix per batch element (single VPU pass,
    # done once per grid step on already-resident tiles):
    #   a_comb[b] = beta * A0[b]^T + gamma * A1^T
    a_comb = (beta * a0t_ref[...].astype(jnp.float32)
              + gamma * a1t_ref[...].astype(jnp.float32)[None, :, :]).astype(cdt)

    # alpha * x hoisted out of the hop loop (kept in f32 for the recurrence).
    ax = alpha * x.astype(jnp.float32)                          # (TN, V, C)

    # ho @ W == sum_d h_d @ W_d : accumulate per hop into one f32 (TN*V, H) slab.
    # (Leading-dim reshape is layout-free when V is a multiple of 8, as in the demo.)
    h = x
    acc = jnp.dot(h.reshape(tn * v, c), wm_ref[0],
                  preferred_element_type=jnp.float32)           # (TN*V, H)
    for d in range(gdep):
        conv = jnp.einsum('bwv,bvc->bwc', a_comb, h,
                          preferred_element_type=jnp.float32)   # (TN, V, C)
        h = (ax + conv).astype(cdt)
        acc = acc + jnp.dot(h.reshape(tn * v, c), wm_ref[d + 1],
                            preferred_element_type=jnp.float32)

    out = acc + b_ref[...].astype(jnp.float32)                  # bias added once
    o_ref[...] = out.reshape(tn, v, h_dim).astype(o_ref.dtype)  # one lane-dense store


def _vmem_capacity_bytes():
    try:
        info = pltpu.get_tpu_info()
        cap = getattr(info, "vmem_capacity_bytes", None)
        if cap:
            return int(cap)
    except Exception:
        pass
    return 64 * 2 ** 20   # conservative default: v7x per-TensorCore VMEM


def gcn_rnn_forward(x, adj0, adj1, mlp_weight, mlp_bias, *,
                    gdep, alpha, beta, gamma, tn=None, compute_dtype=None):
    """Pallas equivalent of gcn.forward(x, [adj0, adj1]) with type='RNN', use_subgraph=False.

    x          : (N, V, C)
    adj0       : (N, V, V)               per-batch adjacency (gconv_RNN)
    adj1       : (V, V)                  shared adjacency (gconv_hyper)
    mlp_weight : (H, (gdep+1)*C)         torch nn.Linear layout (out_features, in_features)
    mlp_bias   : (H,)
    returns    : (N, V, H), dtype of x.  compute_dtype (e.g. jnp.bfloat16) controls
                 matmul-operand precision; accumulation is always f32.
    """
    N, V, C = x.shape
    assert adj0.shape == (N, V, V), adj0.shape
    assert adj1.shape == (V, V), adj1.shape
    H, c_in = mlp_weight.shape
    assert c_in == (gdep + 1) * C, (c_in, gdep, C)
    assert mlp_bias.shape == (H,), mlp_bias.shape

    out_dtype = x.dtype
    if compute_dtype is None:
        compute_dtype = x.dtype
    in_bytes = jnp.dtype(compute_dtype).itemsize
    out_bytes = jnp.dtype(out_dtype).itemsize

    # ---- wrapper-side layout plumbing (cheap, fused by XLA) ----
    #  - transpose both adjacencies so every in-kernel contraction is MXU-canonical
    #    (no in-kernel vxpose),
    #  - split the MLP weight into per-hop (C, H) blocks to kill the concat,
    #  - cast matmul operands to compute_dtype (bf16 halves the adj0 HBM stream).
    xc = x.astype(compute_dtype)
    a0t = jnp.swapaxes(adj0, 1, 2).astype(compute_dtype)        # (N, W, V)
    a1t = adj1.T.astype(compute_dtype)                          # (W, V)
    wm = mlp_weight.T.reshape(gdep + 1, C, H).astype(compute_dtype)
    bm = mlp_bias.reshape(1, H).astype(jnp.float32)

    # ---- batch block size (tn) and VMEM budget ----
    def step_bytes(t):
        dbuf = 2 * t * (V * C * in_bytes + V * V * in_bytes + V * H * out_bytes)
        const = 2 * (V * V * in_bytes + (gdep + 1) * C * H * in_bytes + H * 4)
        return dbuf + const

    cap = _vmem_capacity_bytes()
    budget = min(int(0.625 * cap), 80 * 2 ** 20)   # <= ~40 MiB on v7x's 64 MiB VMEM

    if tn is None:
        # Keep >= 2 grid steps when N >= 2 (feeds both v7x TensorCores; negligible
        # cost on single-TC v5e/v6e), and take the largest tn whose double-buffered
        # tiles fit the VMEM budget.
        tn_max = max(1, -(-N // 2)) if N >= 2 else 1
        tn = 1
        for t in range(tn_max, 0, -1):
            if step_bytes(t) <= budget:
                tn = t
                break
    tn = max(1, min(int(tn), N))

    # Ragged batch: pad N up to a multiple of tn (zero rows are harmless and sliced
    # off) instead of shrinking tn to 1 and paying per-step overhead N times.
    n_blocks = int(pl.cdiv(N, tn))
    n_pad = n_blocks * tn
    if n_pad != N:
        pad = n_pad - N
        xc = jnp.pad(xc, ((0, pad), (0, 0), (0, 0)))
        a0t = jnp.pad(a0t, ((0, pad), (0, 0), (0, 0)))
    grid = (n_blocks,)

    # Advisory cost hint (merged conv: one (V,V)x(V,C) matmul per hop per batch).
    flops = N * (gdep * 2 * V * V * C                 # merged graph conv per hop
                 + (gdep + 1) * 2 * V * C * H         # per-hop MLP blocks
                 + gdep * 2 * V * C                   # ax add / scale
                 + 3 * V * V)                         # a_comb construction
    bytes_accessed = (in_bytes * (xc.size + a0t.size + a1t.size + wm.size)
                      + 4 * bm.size + out_bytes * n_pad * V * H)
    cost = pl.CostEstimate(flops=int(flops), transcendentals=0,
                           bytes_accessed=int(bytes_accessed))

    vmem_limit = int(min(max(2 * step_bytes(tn), 16 * 2 ** 20), budget))

    kernel = functools.partial(_gcn_rnn_kernel, gdep=gdep, alpha=alpha,
                               beta=beta, gamma=gamma)

    out = pl.pallas_call(
        kernel,
        out_shape=jax.ShapeDtypeStruct((n_pad, V, H), out_dtype),
        grid_spec=pltpu.PrefetchScalarGridSpec(
            num_scalar_prefetch=0,
            grid=grid,
            in_specs=[
                pl.BlockSpec((tn, V, C), lambda n: (n, 0, 0)),        # x
                pl.BlockSpec((tn, V, V), lambda n: (n, 0, 0)),        # adj0^T
                pl.BlockSpec((V, V), lambda n: (0, 0)),               # adj1^T (resident)
                pl.BlockSpec((gdep + 1, C, H), lambda n: (0, 0, 0)),  # MLP weight blocks
                pl.BlockSpec((1, H), lambda n: (0, 0)),               # MLP bias
            ],
            out_specs=pl.BlockSpec((tn, V, H), lambda n: (n, 0, 0)),
        ),
        compiler_params=pltpu.CompilerParams(
            dimension_semantics=("parallel",),
            vmem_limit_bytes=vmem_limit,
        ),
        cost_estimate=cost,
    )(xc, a0t, a1t, wm, bm)

    return out[:N] if n_pad != N else out


def _gcn_rnn_reference(x, adj0, adj1, mlp_weight, mlp_bias, *, gdep, alpha, beta, gamma):
    """Pure-JAX reference matching PyTorch gcn.forward (RNN type, no subgraph)."""
    hp = jax.lax.Precision.HIGHEST
    h = x
    out = [h]
    for _ in range(gdep):
        h = (alpha * x
             + beta * jnp.einsum('nvc,nvw->nwc', h, adj0, precision=hp)
             + gamma * jnp.einsum('nvc,vw->nwc', h, adj1, precision=hp))
        out.append(h)
    ho = jnp.concatenate(out, axis=-1)
    return jnp.dot(ho, mlp_weight.T, precision=hp) + mlp_bias


if __name__ == "__main__":
    key = jax.random.PRNGKey(0)
    kx, k0, k1, kw, kb = jax.random.split(key, 5)

    # Small shapes consistent with the module: batch N, nodes V (=W), channels C,
    # gdep diffusion hops, MLP width H (multiple of 128 keeps output stores lane-dense).
    N, V, C, H, gdep = 8, 16, 32, 128, 2
    alpha, beta, gamma = 0.05, 0.475, 0.475

    x = jax.random.normal(kx, (N, V, C), dtype=jnp.float32)
    adj0 = jax.random.uniform(k0, (N, V, V), dtype=jnp.float32) / V
    adj1 = jax.random.uniform(k1, (V, V), dtype=jnp.float32) / V
    mlp_weight = (jax.random.normal(kw, (H, (gdep + 1) * C), dtype=jnp.float32)
                  / jnp.sqrt(float((gdep + 1) * C)))
    mlp_bias = 0.1 * jax.random.normal(kb, (H,), dtype=jnp.float32)

    ref = _gcn_rnn_reference(x, adj0, adj1, mlp_weight, mlp_bias,
                             gdep=gdep, alpha=alpha, beta=beta, gamma=gamma)

    # f32 operand path.
    out_f32 = jax.block_until_ready(
        gcn_rnn_forward(x, adj0, adj1, mlp_weight, mlp_bias,
                        gdep=gdep, alpha=alpha, beta=beta, gamma=gamma,
                        compute_dtype=jnp.float32))
    assert out_f32.shape == (N, V, H)
    assert jnp.allclose(out_f32, ref, atol=1e-2, rtol=1e-2), \
        float(jnp.max(jnp.abs(out_f32 - ref)))

    # bf16 matmul operands, f32 accumulation (fast path; halves the adj0 HBM stream).
    out_bf16 = jax.block_until_ready(
        gcn_rnn_forward(x, adj0, adj1, mlp_weight, mlp_bias,
                        gdep=gdep, alpha=alpha, beta=beta, gamma=gamma,
                        compute_dtype=jnp.bfloat16))
    assert out_bf16.shape == (N, V, H)
    assert jnp.allclose(out_bf16, ref, atol=5e-2, rtol=3e-2), \
        float(jnp.max(jnp.abs(out_bf16 - ref)))

    print("KERNEL_OK")
</pallas_src>

<mosaic_0001>
module attributes {stable_mosaic.version = 11 : i64} {
  func.func @_gcn_rnn_kernel(%arg0: i32, %arg1: memref<4x16x32xf32, #tpu.memory_space<vmem>>, %arg2: memref<4x16x16xf32, #tpu.memory_space<vmem>>, %arg3: memref<16x16xf32, #tpu.memory_space<vmem>>, %arg4: memref<3x32x128xf32, #tpu.memory_space<vmem>>, %arg5: memref<1x128xf32, #tpu.memory_space<vmem>>, %arg6: memref<4x16x128xf32, #tpu.memory_space<vmem>>) attributes {dimension_semantics = [#tpu.dimension_semantics<parallel>], iteration_bounds = array<i64: 2>, scalar_prefetch = 0 : i64, scratch_operands = 0 : i64, tpu.core_type = #tpu.core_type<tc>, window_params = [{transform_indices = @transform_0, window_bounds = array<i64: 4, 16, 32>}, {transform_indices = @transform_1, window_bounds = array<i64: 4, 16, 16>}, {pipeline_mode = #tpu.pipeline_mode<synchronous>, transform_indices = @transform_2, window_bounds = array<i64: 16, 16>}, {pipeline_mode = #tpu.pipeline_mode<synchronous>, transform_indices = @transform_3, window_bounds = array<i64: 3, 32, 128>}, {pipeline_mode = #tpu.pipeline_mode<synchronous>, transform_indices = @transform_4, window_bounds = array<i64: 1, 128>}, {transform_indices = @transform_5, window_bounds = array<i64: 4, 16, 128>}]} {
    %c0 = arith.constant 0 : index
    %c0_0 = arith.constant 0 : index
    %c0_1 = arith.constant 0 : index
    %0 = vector.load %arg1[%c0, %c0_0, %c0_1] : memref<4x16x32xf32, #tpu.memory_space<vmem>>, vector<4x16x32xf32>
    %c0_2 = arith.constant 0 : index
    %c0_3 = arith.constant 0 : index
    %c0_4 = arith.constant 0 : index
    %1 = vector.load %arg2[%c0_2, %c0_3, %c0_4] : memref<4x16x16xf32, #tpu.memory_space<vmem>>, vector<4x16x16xf32>
    %cst = arith.constant 4.750000e-01 : f32
    %2 = vector.broadcast %cst : f32 to vector<4x16x16xf32>
    %3 = arith.mulf %2, %1 : vector<4x16x16xf32>
    %c0_5 = arith.constant 0 : index
    %c0_6 = arith.constant 0 : index
    %4 = vector.load %arg3[%c0_5, %c0_6] : memref<16x16xf32, #tpu.memory_space<vmem>>, vector<16x16xf32>
    %5 = vector.shape_cast %4 : vector<16x16xf32> to vector<1x16x16xf32>
    %cst_7 = arith.constant 4.750000e-01 : f32
    %6 = vector.broadcast %cst_7 : f32 to vector<1x16x16xf32>
    %7 = arith.mulf %6, %5 : vector<1x16x16xf32>
    %8 = vector.broadcast %7 : vector<1x16x16xf32> to vector<4x16x16xf32>
    %9 = arith.addf %3, %8 : vector<4x16x16xf32>
    %cst_8 = arith.constant 5.000000e-02 : f32
    %10 = vector.broadcast %cst_8 : f32 to vector<4x16x32xf32>
    %11 = arith.mulf %10, %0 : vector<4x16x32xf32>
    %12 = vector.shape_cast %0 : vector<4x16x32xf32> to vector<64x32xf32>
    %c0_9 = arith.constant 0 : index
    %c0_10 = arith.constant 0 : index
    %c0_11 = arith.constant 0 : index
    %13 = vector.load %arg4[%c0_9, %c0_10, %c0_11] : memref<3x32x128xf32, #tpu.memory_space<vmem>>, vector<1x32x128xf32>
    %14 = vector.shape_cast %13 : vector<1x32x128xf32> to vector<32x128xf32>
    %cst_12 = arith.constant dense<0.000000e+00> : vector<64x128xf32>
    %15 = tpu.matmul %12, %14, %cst_12 {dimension_numbers = #tpu.dot_dimension_numbers<[1], [0], [0], [1], [0, 0, 1, 1], [], []>} : vector<64x32xf32>, vector<32x128xf32>, vector<64x128xf32> -> vector<64x128xf32>
    "tpu.trace_start"() <{level = 10 : i32, message = "bwv,bvc->bwc"}> : () -> ()
    %cst_13 = arith.constant dense<0.000000e+00> : vector<4x16x32xf32>
    %16 = tpu.matmul %9, %0, %cst_13 {dimension_numbers = #tpu.dot_dimension_numbers<[2], [1], [1], [2], [0, 0, 0, 1, 1, 2], [0], [0]>} : vector<4x16x16xf32>, vector<4x16x32xf32>, vector<4x16x32xf32> -> vector<4x16x32xf32>
    "tpu.trace_stop"() : () -> ()
    %17 = arith.addf %11, %16 : vector<4x16x32xf32>
    %18 = vector.shape_cast %17 : vector<4x16x32xf32> to vector<64x32xf32>
    %c1 = arith.constant 1 : index
    %c0_14 = arith.constant 0 : index
    %c0_15 = arith.constant 0 : index
    %19 = vector.load %arg4[%c1, %c0_14, %c0_15] : memref<3x32x128xf32, #tpu.memory_space<vmem>>, vector<1x32x128xf32>
    %20 = vector.shape_cast %19 : vector<1x32x128xf32> to vector<32x128xf32>
    %cst_16 = arith.constant dense<0.000000e+00> : vector<64x128xf32>
    %21 = tpu.matmul %18, %20, %cst_16 {dimension_numbers = #tpu.dot_dimension_numbers<[1], [0], [0], [1], [0, 0, 1, 1], [], []>} : vector<64x32xf32>, vector<32x128xf32>, vector<64x128xf32> -> vector<64x128xf32>
    %22 = arith.addf %15, %21 : vector<64x128xf32>
    "tpu.trace_start"() <{level = 10 : i32, message = "bwv,bvc->bwc"}> : () -> ()
    %cst_17 = arith.constant dense<0.000000e+00> : vector<4x16x32xf32>
    %23 = tpu.matmul %9, %17, %cst_17 {dimension_numbers = #tpu.dot_dimension_numbers<[2], [1], [1], [2], [0, 0, 0, 1, 1, 2], [0], [0]>} : vector<4x16x16xf32>, vector<4x16x32xf32>, vector<4x16x32xf32> -> vector<4x16x32xf32>
    "tpu.trace_stop"() : () -> ()
    %24 = arith.addf %11, %23 : vector<4x16x32xf32>
    %25 = vector.shape_cast %24 : vector<4x16x32xf32> to vector<64x32xf32>
    %c2 = arith.constant 2 : index
    %c0_18 = arith.constant 0 : index
    %c0_19 = arith.constant 0 : index
    %26 = vector.load %arg4[%c2, %c0_18, %c0_19] : memref<3x32x128xf32, #tpu.memory_space<vmem>>, vector<1x32x128xf32>
    %27 = vector.shape_cast %26 : vector<1x32x128xf32> to vector<32x128xf32>
    %cst_20 = arith.constant dense<0.000000e+00> : vector<64x128xf32>
    %28 = tpu.matmul %25, %27, %cst_20 {dimension_numbers = #tpu.dot_dimension_numbers<[1], [0], [0], [1], [0, 0, 1, 1], [], []>} : vector<64x32xf32>, vector<32x128xf32>, vector<64x128xf32> -> vector<64x128xf32>
    %29 = arith.addf %22, %28 : vector<64x128xf32>
    %c0_21 = arith.constant 0 : index
    %c0_22 = arith.constant 0 : index
    %30 = vector.load %arg5[%c0_21, %c0_22] : memref<1x128xf32, #tpu.memory_space<vmem>>, vector<1x128xf32>
    %31 = vector.broadcast %30 : vector<1x128xf32> to vector<64x128xf32>
    %32 = arith.addf %29, %31 : vector<64x128xf32>
    %33 = vector.shape_cast %32 : vector<64x128xf32> to vector<4x16x128xf32>
    %c0_23 = arith.constant 0 : index
    %c0_24 = arith.constant 0 : index
    %c0_25 = arith.constant 0 : index
    %34 = vector.load %arg6[%c0_23, %c0_24, %c0_25] : memref<4x16x128xf32, #tpu.memory_space<vmem>>, vector<4x16x128xf32>
    tpu.vector_store %arg6[%c0_23, %c0_24, %c0_25], %33 {strides = array<i32>} : memref<4x16x128xf32, #tpu.memory_space<vmem>>, vector<4x16x128xf32>,
    return
  }
  func.func @transform_0(%arg0: i32) -> (i32, i32, i32) {
    %c0_i32 = arith.constant 0 : i32
    %c0_i32_0 = arith.constant 0 : i32
    %c0_i32_1 = arith.constant 0 : i32
    return %arg0, %c0_i32, %c0_i32_0 : i32, i32, i32
  }
  func.func @transform_1(%arg0: i32) -> (i32, i32, i32) {
    %c0_i32 = arith.constant 0 : i32
    %c0_i32_0 = arith.constant 0 : i32
    %c0_i32_1 = arith.constant 0 : i32
    return %arg0, %c0_i32, %c0_i32_0 : i32, i32, i32
  }
  func.func @transform_2(%arg0: i32) -> (i32, i32) {
    %c0_i32 = arith.constant 0 : i32
    %c0_i32_0 = arith.constant 0 : i32
    %c0_i32_1 = arith.constant 0 : i32
    return %c0_i32, %c0_i32_0 : i32, i32
  }
  func.func @transform_3(%arg0: i32) -> (i32, i32, i32) {
    %c0_i32 = arith.constant 0 : i32
    %c0_i32_0 = arith.constant 0 : i32
    %c0_i32_1 = arith.constant 0 : i32
    %c0_i32_2 = arith.constant 0 : i32
    return %c0_i32, %c0_i32_0, %c0_i32_1 : i32, i32, i32
  }
  func.func @transform_4(%arg0: i32) -> (i32, i32) {
    %c0_i32 = arith.constant 0 : i32
    %c0_i32_0 = arith.constant 0 : i32
    %c0_i32_1 = arith.constant 0 : i32
    return %c0_i32, %c0_i32_0 : i32, i32
  }
  func.func @transform_5(%arg0: i32) -> (i32, i32, i32) {
    %c0_i32 = arith.constant 0 : i32
    %c0_i32_0 = arith.constant 0 : i32
    %c0_i32_1 = arith.constant 0 : i32
    return %arg0, %c0_i32, %c0_i32_0 : i32, i32, i32
  }
}

</mosaic_0001>

<llo_original>
// kernel: tpu_custom_call.1
$region0: #{tpu_custom_call.1}
  #allocation0 [shape = 'u32[]', space=smem, size = 0x4, offset = 0x4, fixed_abs, tag = 'smem constant byte address 0x4 - core index']
  #allocation1 [shape = 'u32[144,128]{1,0:T(1,128)}', space=vmem, size = 0x12000, scoped, tag = 'internal scratch']
  %s0 = inlined_call_operand.hbm [shape: f32[8,16,32], index: 0, kind: input, shape index: {}]
  %s1 = inlined_call_operand.hbm [shape: f32[8,16,16], index: 1, kind: input, shape index: {}]
  %s2 = inlined_call_operand.hbm [shape: f32[16,16], index: 2, kind: input, shape index: {}]
  %s3 = inlined_call_operand.hbm [shape: f32[3,32,128], index: 3, kind: input, shape index: {}]
  %s4 = inlined_call_operand.vmem [shape: f32[1,128], index: 4, kind: input, shape index: {}]
  %s5 = inlined_call_operand.hbm [shape: f32[8,16,128], index: 5, kind: output, shape index: {}]
  %s6 = sld [smem:[#allocation0]]
  $region69: #{tpu_custom_call.1} parent=0
    _
  %s8 = ssub.s32 1, %s6
  %s9 = scalar_select 0, %s8, %s6
  $region1: #{tpu_custom_call.1} parent=0
    #allocation2 [shape = 'u8[65536]{0}', space=vmem, size = 0x10000, scoped, tag = 'input window, operand 0']
    #allocation3 [shape = 's32[2]{0}', space=sflag, size = 0x8, scoped, tag = 'scoped memory for tpu_custom_call.1']
    #allocation4 [shape = 's32[2]{0}', space=sflag, size = 0x8, scoped, tag = 'scoped memory for tpu_custom_call.1']
    #allocation5 [shape = 'u8[65536]{0}', space=vmem, size = 0x10000, scoped, tag = 'input window, operand 1']
    #allocation6 [shape = 's32[2]{0}', space=sflag, size = 0x8, scoped, tag = 'scoped memory for tpu_custom_call.1']
    #allocation7 [shape = 'u8[8192]{0}', space=vmem, size = 0x2000, scoped, tag = 'input window, operand 2, single buffered']
    #allocation8 [shape = 'u8[49152]{0}', space=vmem, size = 0xc000, scoped, tag = 'input window, operand 3, single buffered']
    #allocation9 [shape = 's32[1]{0}', space=sflag, size = 0x4, scoped, tag = 'scoped memory for tpu_custom_call.1']
    #allocation10 [shape = 'u8[65536]{0}', space=vmem, size = 0x10000, scoped, tag = 'output window, operand 0']
    %10 = vsyncpa [#allocation3], 0
    %s11 = scalar_lea.sflag [#allocation3], 1
    %12 = vsyncpa %s11, 0
    %13 = vsyncpa [#allocation6], 0
    %s14 = scalar_lea.sflag [#allocation6], 1
    %15 = vsyncpa %s14, 0
    %16 = vsyncpa [#allocation9], 0
    %17 = vsyncpa [#allocation4], 0
    %s18 = scalar_lea.sflag [#allocation4], 1
    %19 = vsyncpa %s18, 0
    loop: start=0, step=1, limit=4
    $region2: #{tpu_custom_call.1} parent=1 // loop_pre_header
      _
    $region3: #{tpu_custom_call.1} parent=1 // loop_header
      %s21 = sphi 0, %s25
      %p22 = scmp.ge.s32.totalorder %s21, 4
      %s31 = sphi 0, %s33
      %s34 = sphi 0, %s31
      %s35 = sphi 0, %s34
      %s51 = sphi 0, %s35
      %s57 = sphi 0, %s59
      %s60 = sphi 0, %s57
      %s61 = sphi 0, %s60
      %s77 = sphi 0, %s61
      %s81 = sphi 0, %s81
      %s83 = sphi 0, %s81
      %s84 = sphi 0, %s83
      %s98 = sphi 0, %s84
      %s102 = sphi 0, %s102
      %s104 = sphi 0, %s102
      %s105 = sphi 0, %s104
      %s119 = sphi 0, %s105
      %s123 = sphi 0, %s123
      %s125 = sphi 0, %s123
      %s126 = sphi 0, %s125
      %s140 = sphi 0, %s126
      %s146 = sphi 0, %s148
      %s149 = sphi 0, %s146
      %s150 = sphi 0, %s149
      %s166 = sphi 0, %s150
    $region4: #{tpu_custom_call.1} parent=1 // loop_header_branch
      %24 = sbr.rel (%p22) target = $region8
    $region5: #{tpu_custom_call.1} parent=1 // loop_body
      %s26 = ssub.s32 %s21, 1
      %s27 = ssub.s32 %s21, 2
      %s28 = sadd.s32 %s21, 1
      %s29 = ssub.s32 %s21, %s28
      %p30 = scmp.eq.s32.totalorder %s29, 0
      %s32 = sadd.s32 %s31, 1
      %s33 = scalar_select %p30, %s31, %s32
      %p36 = pneg %p30
      %p37 = scmp.eq.s32.totalorder %s21, 1
      %p38 = por %p36, %p37
      %p39 = scmp.ne.s32.totalorder %s31, %s34
      %p40 = scmp.eq.s32.totalorder %s21, 0
      %p41 = por %p39, %p40
      %p42 = scmp.ne.s32.totalorder %s31, %s34
      %p43 = scmp.eq.s32.totalorder %s26, 1
      %p44 = por %p42, %p43
      %p45 = scmp.ne.s32.totalorder %s34, %s35
      %p46 = scmp.eq.s32.totalorder %s26, 0
      %p47 = por %p45, %p46
      %p48 = scmp.ne.s32.totalorder %s34, %s35
      %p49 = scmp.eq.s32.totalorder %s27, 1
      %p50 = por %p48, %p49
      %p52 = scmp.ne.s32.totalorder %s35, %s51
      %p53 = scmp.eq.s32.totalorder %s27, 0
      %p54 = por %p52, %p53
      %s55 = ssub.s32 %s21, %s28
      %p56 = scmp.eq.s32.totalorder %s55, 0
      %s58 = sadd.s32 %s57, 1
      %s59 = scalar_select %p56, %s57, %s58
      %p62 = pneg %p56
      %p63 = scmp.eq.s32.totalorder %s21, 1
      %p64 = por %p62, %p63
      %p65 = scmp.ne.s32.totalorder %s57, %s60
      %p66 = scmp.eq.s32.totalorder %s21, 0
      %p67 = por %p65, %p66
      %p68 = scmp.ne.s32.totalorder %s57, %s60
      %p69 = scmp.eq.s32.totalorder %s26, 1
      %p70 = por %p68, %p69
      %p71 = scmp.ne.s32.totalorder %s60, %s61
      %p72 = scmp.eq.s32.totalorder %s26, 0
      %p73 = por %p71, %p72
      %p74 = scmp.ne.s32.totalorder %s60, %s61
      %p75 = scmp.eq.s32.totalorder %s27, 1
      %p76 = por %p74, %p75
      %p78 = scmp.ne.s32.totalorder %s61, %s77
      %p79 = scmp.eq.s32.totalorder %s27, 0
      %p80 = por %p78, %p79
      %s82 = sadd.s32 %s81, 1
      %p85 = scmp.eq.s32.totalorder %s21, 1
      %p86 = scmp.ne.s32.totalorder %s81, %s83
      %p87 = scmp.eq.s32.totalorder %s21, 0
      %p88 = por %p86, %p87
      %p89 = scmp.ne.s32.totalorder %s81, %s83
      %p90 = scmp.eq.s32.totalorder %s26, 1
      %p91 = por %p89, %p90
      %p92 = scmp.ne.s32.totalorder %s83, %s84
      %p93 = scmp.eq.s32.totalorder %s26, 0
      %p94 = por %p92, %p93
      %p95 = scmp.ne.s32.totalorder %s83, %s84
      %p96 = scmp.eq.s32.totalorder %s27, 1
      %p97 = por %p95, %p96
      %p99 = scmp.ne.s32.totalorder %s84, %s98
      %p100 = scmp.eq.s32.totalorder %s27, 0
      %p101 = por %p99, %p100
      %s103 = sadd.s32 %s102, 1
      %p106 = scmp.eq.s32.totalorder %s21, 1
      %p107 = scmp.ne.s32.totalorder %s102, %s104
      %p108 = scmp.eq.s32.totalorder %s21, 0
      %p109 = por %p107, %p108
      %p110 = scmp.ne.s32.totalorder %s102, %s104
      %p111 = scmp.eq.s32.totalorder %s26, 1
      %p112 = por %p110, %p111
      %p113 = scmp.ne.s32.totalorder %s104, %s105
      %p114 = scmp.eq.s32.totalorder %s26, 0
      %p115 = por %p113, %p114
      %p116 = scmp.ne.s32.totalorder %s104, %s105
      %p117 = scmp.eq.s32.totalorder %s27, 1
      %p118 = por %p116, %p117
      %p120 = scmp.ne.s32.totalorder %s105, %s119
      %p121 = scmp.eq.s32.totalorder %s27, 0
      %p122 = por %p120, %p121
      %s124 = sadd.s32 %s123, 1
      %p127 = scmp.eq.s32.totalorder %s21, 1
      %p128 = scmp.ne.s32.totalorder %s123, %s125
      %p129 = scmp.eq.s32.totalorder %s21, 0
      %p130 = por %p128, %p129
      %p131 = scmp.ne.s32.totalorder %s123, %s125
      %p132 = scmp.eq.s32.totalorder %s26, 1
      %p133 = por %p131, %p132
      %p134 = scmp.ne.s32.totalorder %s125, %s126
      %p135 = scmp.eq.s32.totalorder %s26, 0
      %p136 = por %p134, %p135
      %p137 = scmp.ne.s32.totalorder %s125, %s126
      %p138 = scmp.eq.s32.totalorder %s27, 1
      %p139 = por %p137, %p138
      %p141 = scmp.ne.s32.totalorder %s126, %s140
      %p142 = scmp.eq.s32.totalorder %s27, 0
      %p143 = por %p141, %p142
      %s144 = ssub.s32 %s21, %s28
      %p145 = scmp.eq.s32.totalorder %s144, 0
      %s147 = sadd.s32 %s146, 1
      %s148 = scalar_select %p145, %s146, %s147
      %p151 = pneg %p145
      %p152 = scmp.eq.s32.totalorder %s21, 1
      %p153 = por %p151, %p152
      %p154 = scmp.ne.s32.totalorder %s146, %s149
      %p155 = scmp.eq.s32.totalorder %s21, 0
      %p156 = por %p154, %p155
      %p157 = scmp.ne.s32.totalorder %s146, %s149
      %p158 = scmp.eq.s32.totalorder %s26, 1
      %p159 = por %p157, %p158
      %p160 = scmp.ne.s32.totalorder %s149, %s150
      %p161 = scmp.eq.s32.totalorder %s26, 0
      %p162 = por %p160, %p161
      %p163 = scmp.ne.s32.totalorder %s149, %s150
      %p164 = scmp.eq.s32.totalorder %s27, 1
      %p165 = por %p163, %p164
      %p167 = scmp.ne.s32.totalorder %s150, %s166
      %p168 = scmp.eq.s32.totalorder %s27, 0
      %p169 = por %p167, %p168
      %p170 = scmp.le.s32.totalorder 1, %s21
      %p171 = scmp.lt.s32.totalorder %s21, 3
      %p172 = pnand %p170, %p171
      %p173 = pneg %p172
      // Predicated region
      $region9: #{tpu_custom_call.1} parent=5 // pred_check
        _
      $region10: #{tpu_custom_call.1} parent=5 // pred_check_branch
        %175 = sbr.rel (%p172) target = $region12
      $region11: #{tpu_custom_call.1} parent=5 // pred_region
        %s176 = ssub.s32 %s21, 1
        // Predicated region
        $region13: #{tpu_custom_call.1} parent=11 // pred_check
          %p177 = pneg %p94
        $region14: #{tpu_custom_call.1} parent=11 // pred_check_branch
          %179 = sbr.rel (%p177) target = $region16
        $region15: #{tpu_custom_call.1} parent=11 // pred_region
          %s181 = ssub.s32 256, 256
          %182 = vsyncadd [#allocation6], %s181
          %s183 = sshll.u32 [#allocation7], 4
          %s184 = int_to_ptr.vmem [resolvable:$true] %s183
          %189 = dma.hbm_to_vmem [thread:$0]  %s2, 256, %s184, [#allocation6], 128, 128, 8
        $region16: #{tpu_custom_call.1} parent=11 // pred_fallthru
          _
        // Predicated region
        $region17: #{tpu_custom_call.1} parent=11 // pred_check
          %p190 = pneg %p115
        $region18: #{tpu_custom_call.1} parent=11 // pred_check_branch
          %192 = sbr.rel (%p190) target = $region20
        $region19: #{tpu_custom_call.1} parent=11 // pred_region
          %s194 = ssub.s32 1536, 1536
          %195 = vsyncadd [#allocation9], %s194
          %s196 = sshll.u32 [#allocation8], 4
          %s197 = int_to_ptr.vmem [resolvable:$true] %s196
          %202 = dma.hbm_to_vmem [thread:$0]  %s3, 1536, %s197, [#allocation9], 128, 128, 8
        $region20: #{tpu_custom_call.1} parent=11 // pred_fallthru
          _
        // Predicated region
        $region21: #{tpu_custom_call.1} parent=11 // pred_check
          %p203 = pneg %p136
        $region22: #{tpu_custom_call.1} parent=11 // pred_check_branch
          %205 = sbr.rel (%p203) target = $region24
        $region23: #{tpu_custom_call.1} parent=11 // pred_region
          _
        $region24: #{tpu_custom_call.1} parent=11 // pred_fallthru
          _
      $region12: #{tpu_custom_call.1} parent=5 // pred_fallthru
        _
      %p206 = scmp.lt.s32.totalorder %s21, 2
      // Predicated region
      $region25: #{tpu_custom_call.1} parent=5 // pred_check
        %p207 = pneg %p206
      $region26: #{tpu_custom_call.1} parent=5 // pred_check_branch
        %209 = sbr.rel (%p207) target = $region28
      $region27: #{tpu_custom_call.1} parent=5 // pred_region
        // Predicated region
        $region29: #{tpu_custom_call.1} parent=27 // pred_check
          %p210 = pneg %p41
        $region30: #{tpu_custom_call.1} parent=27 // pred_check_branch
          %212 = sbr.rel (%p210) target = $region32
        $region31: #{tpu_custom_call.1} parent=27 // pred_region
          %s213 = sand.u32 %s31, 1
          %s214 = scalar_lea.sflag [#allocation3], %s213
          %s215 = sand.u32 %s31, 1
          %s216 = smul.addr %s215, 64
          %s217 = scalar_lea.vmem [#allocation2], %s216
          %s218 = smul.u32 4, %s21
          %s220 = ssub.s32 1024, 1024
          %221 = vsyncadd %s214, %s220
          %s222 = smul.addr %s218, 2
          %s223 = smul.addr %s222, 128
          %s224 = scalar_lea.hbm %s0, %s223
          %s225 = sshll.u32 %s217, 4
          %s226 = int_to_ptr.vmem [resolvable:$true] %s225
          %231 = dma.hbm_to_vmem [thread:$0]  %s224, 1024, %s226, %s214, 128, 128, 8
        $region32: #{tpu_custom_call.1} parent=27 // pred_fallthru
          _
        // Predicated region
        $region33: #{tpu_custom_call.1} parent=27 // pred_check
          %p232 = pneg %p67
        $region34: #{tpu_custom_call.1} parent=27 // pred_check_branch
          %234 = sbr.rel (%p232) target = $region36
        $region35: #{tpu_custom_call.1} parent=27 // pred_region
          %s235 = sand.u32 %s21, 1
          %s236 = scalar_lea.sflag [#allocation6], %s235
          %s237 = sand.u32 %s57, 1
          %s238 = smul.addr %s237, 64
          %s239 = scalar_lea.vmem [#allocation5], %s238
          %s240 = smul.u32 4, %s21
          %s242 = ssub.s32 1024, 1024
          %243 = vsyncadd %s236, %s242
          %s244 = smul.addr %s240, 2
          %s245 = smul.addr %s244, 128
          %s246 = scalar_lea.hbm %s1, %s245
          %s247 = sshll.u32 %s239, 4
          %s248 = int_to_ptr.vmem [resolvable:$true] %s247
          %253 = dma.hbm_to_vmem [thread:$0]  %s246, 1024, %s248, %s236, 128, 128, 8
        $region36: #{tpu_custom_call.1} parent=27 // pred_fallthru
          _
      $region28: #{tpu_custom_call.1} parent=5 // pred_fallthru
        _
      %p254 = scmp.le.s32.totalorder 1, %s21
      %p255 = scmp.lt.s32.totalorder %s21, 3
      %p256 = pnand %p254, %p255
      %p257 = pneg %p256
      // Predicated region
      $region37: #{tpu_custom_call.1} parent=5 // pred_check
        _
      $region38: #{tpu_custom_call.1} parent=5 // pred_check_branch
        %259 = sbr.rel (%p256) target = $region40
      $region39: #{tpu_custom_call.1} parent=5 // pred_region
        %s260 = ssub.s32 %s21, 1
        %s261 = sand.u32 %s34, 1
        %s262 = scalar_lea.sflag [#allocation3], %s261
        %s263 = sand.u32 %s34, 1
        %s264 = smul.addr %s263, 64
        %s265 = scalar_lea.vmem [#allocation2], %s264
        // Predicated region
        $region41: #{tpu_custom_call.1} parent=39 // pred_check
          %p266 = pneg %p47
        $region42: #{tpu_custom_call.1} parent=39 // pred_check_branch
          %268 = sbr.rel (%p266) target = $region44
        $region43: #{tpu_custom_call.1} parent=39 // pred_region
          %269 = dma.done %s262, 1024
        $region44: #{tpu_custom_call.1} parent=39 // pred_fallthru
          _
        %s270 = sand.u32 %s26, 1
        %s271 = scalar_lea.sflag [#allocation6], %s270
        %s272 = sand.u32 %s60, 1
        %s273 = smul.addr %s272, 64
        %s274 = scalar_lea.vmem [#allocation5], %s273
        // Predicated region
        $region45: #{tpu_custom_call.1} parent=39 // pred_check
          %p275 = pneg %p73
        $region46: #{tpu_custom_call.1} parent=39 // pred_check_branch
          %277 = sbr.rel (%p275) target = $region48
        $region47: #{tpu_custom_call.1} parent=39 // pred_region
          %278 = dma.done %s271, 1024
        $region48: #{tpu_custom_call.1} parent=39 // pred_fallthru
          _
        // Predicated region
        $region49: #{tpu_custom_call.1} parent=39 // pred_check
          %p279 = pneg %p94
        $region50: #{tpu_custom_call.1} parent=39 // pred_check_branch
          %281 = sbr.rel (%p279) target = $region52
        $region51: #{tpu_custom_call.1} parent=39 // pred_region
          %282 = dma.done [#allocation6], 256
        $region52: #{tpu_custom_call.1} parent=39 // pred_fallthru
          _
        // Predicated region
        $region53: #{tpu_custom_call.1} parent=39 // pred_check
          %p283 = pneg %p115
        $region54: #{tpu_custom_call.1} parent=39 // pred_check_branch
          %285 = sbr.rel (%p283) target = $region56
        $region55: #{tpu_custom_call.1} parent=39 // pred_region
          %286 = dma.done [#allocation9], 1536
        $region56: #{tpu_custom_call.1} parent=39 // pred_fallthru
          _
        %s287 = sand.u32 %s34, 1
        %s288 = scalar_lea.sflag [#allocation3], %s287
        %s289 = sand.u32 %s34, 1
        %s290 = smul.addr %s289, 64
        %s291 = scalar_lea.vmem [#allocation2], %s290
        %p292 = pneg %p47
        %p293 = pneg %p44
        %s294 = sand.u32 %s26, 1
        %s295 = scalar_lea.sflag [#allocation6], %s294
        %s296 = sand.u32 %s60, 1
        %s297 = smul.addr %s296, 64
        %s298 = scalar_lea.vmem [#allocation5], %s297
        %p299 = pneg %p73
        %p300 = pneg %p70
        %p301 = pneg %p94
        %p302 = pneg %p91
        %p303 = pneg %p115
        %p304 = pneg %p112
        %p305 = pneg %p136
        %p306 = pneg %p133
        %p307 = pneg %p162
        %p308 = pneg %p159
        %s309 = sand.u32 %s149, 1
        %s310 = scalar_lea.sflag [#allocation4], %s309
        %s311 = sand.u32 %s149, 1
        %s312 = smul.addr %s311, 64
        %s313 = scalar_lea.vmem [#allocation10], %s312
        %s314 = smul.u32 4, %s26
        %s315 = smul.u32 4, %s26
        %s316 = smul.u32 4, %s26
        %v317 = vld [vmem:[%s265] sm:$0xff]
        %v318 = vld [vmem:[%s265 + $0x8] sm:$0xff]
        %v319 = vld [vmem:[%s265 + $0x10] sm:$0xff]
        %v320 = vld [vmem:[%s265 + $0x18] sm:$0xff]
        %v321 = vld [vmem:[%s265 + $0x20] sm:$0xff]
        %v322 = vld [vmem:[%s265 + $0x28] sm:$0xff]
        %v323 = vld [vmem:[%s265 + $0x30] sm:$0xff]
        %v324 = vld [vmem:[%s265 + $0x38] sm:$0xff]
        %v325 = vld [vmem:[%s274] sm:$0xff]
        %v326 = vld [vmem:[%s274 + $0x8] sm:$0xff]
        %v327 = vld [vmem:[%s274 + $0x10] sm:$0xff]
        %v328 = vld [vmem:[%s274 + $0x18] sm:$0xff]
        %v329 = vld [vmem:[%s274 + $0x20] sm:$0xff]
        %v330 = vld [vmem:[%s274 + $0x28] sm:$0xff]
        %v331 = vld [vmem:[%s274 + $0x30] sm:$0xff]
        %v332 = vld [vmem:[%s274 + $0x38] sm:$0xff]
        %v333 = vmul.f32 %v325, 0.475
        %v334 = vmul.f32 %v326, 0.475
        %v335 = vmul.f32 %v327, 0.475
        %v336 = vmul.f32 %v328, 0.475
        %v337 = vmul.f32 %v329, 0.475
        %v338 = vmul.f32 %v330, 0.475
        %v339 = vmul.f32 %v331, 0.475
        %v340 = vmul.f32 %v332, 0.475
        %v341 = vld [vmem:[#allocation7] sm:$0xff]
        %v342 = vld [vmem:[#allocation7 + $0x8] sm:$0xff]
        %v343 = vmul.f32 %v341, 0.475
        %v344 = vmul.f32 %v342, 0.475
        %v345 = vadd.f32 %v333, %v343
        %v346 = vadd.f32 %v334, %v344
        %v347 = vadd.f32 %v335, %v343
        %v348 = vadd.f32 %v336, %v344
        %v349 = vadd.f32 %v337, %v343
        %v350 = vadd.f32 %v338, %v344
        %v351 = vadd.f32 %v339, %v343
        %v352 = vadd.f32 %v340, %v344
        %v353 = vmul.f32 %v317, 0.05
        %v354 = vmul.f32 %v318, 0.05
        %v355 = vmul.f32 %v319, 0.05
        %v356 = vmul.f32 %v320, 0.05
        %v357 = vmul.f32 %v321, 0.05
        %v358 = vmul.f32 %v322, 0.05
        %v359 = vmul.f32 %v323, 0.05
        %v360 = vmul.f32 %v324, 0.05
        %v361 = vld [vmem:[#allocation8] sm:$0xff]
        %v362 = vld [vmem:[#allocation8 + $0x8] sm:$0xff]
        %v363 = vld [vmem:[#allocation8 + $0x10] sm:$0xff]
        %v364 = vld [vmem:[#allocation8 + $0x18] sm:$0xff]
        %vm365 = vcmask 130048
        %v367 = vsel %vm365, %v345, 0
        %v370 = vsel %vm365, %v346, 0
        %372 = vmatprep.subr.mxu0 0.0
        %373 = vmatpush1.msra.mxu0 0.0
        %374 = vmatprep.subr.mxu0 0.0
        %375 = vmatpush1.msra.mxu0 0.0
        %376 = vmatprep.subr.mxu0 0.0
        %377 = vmatpush1.msra.mxu0 0.0
        %378 = vmatprep.subr.mxu0 0.0
        %379 = vmatpush1.msra.mxu0 0.0
        %380 = vmatprep.subr.mxu0 0.0
        %381 = vmatpush1.msra.mxu0 0.0
        %382 = vmatprep.subr.mxu0 0.0
        %383 = vmatpush1.msra.mxu0 0.0
        %384 = vmatprep.subr.mxu0 0.0
        %385 = vmatpush1.msra.mxu0 0.0
        %386 = vmatprep.subr.mxu0 0.0
        %387 = vmatpush1.msra.mxu0 0.0
        %388 = vmatprep.subr.mxu0 0.0
        %389 = vmatpush1.msra.mxu0 0.0
        %390 = vmatprep.subr.mxu0 0.0
        %391 = vmatpush1.msra.mxu0 0.0
        %392 = vmatprep.subr.mxu0 0.0
        %393 = vmatpush1.msra.mxu0 0.0
        %394 = vmatprep.subr.mxu0 0.0
        %395 = vmatpush1.msra.mxu0 0.0
        %396 = vmatprep.subr.mxu0 0.0
        %397 = vmatpush1.msra.mxu0 0.0
        %398 = vmatprep.subr.mxu0 0.0
        %399 = vmatpush1.msra.mxu0 0.0
        %400 = vmatprep.subr.mxu0 0.0
        %401 = vmatpush1.msra.mxu0 %v318
        %402 = vmatprep.subr.mxu0 0.0
        %403 = vmatpush1.msra.mxu0 %v317
        %404 = vmatprep.subr.mxu0 0.0
        %405 = vmatpush2.msra.mxu0 0.0
        %406 = vmatprep.subr.mxu0 0.0
        %407 = vmatpush2.msra.mxu0 0.0
        %408 = vmatprep.subr.mxu0 0.0
        %409 = vmatpush2.msra.mxu0 0.0
        %410 = vmatprep.subr.mxu0 0.0
        %411 = vmatpush2.msra.mxu0 0.0
        %412 = vmatprep.subr.mxu0 0.0
        %413 = vmatpush2.msra.mxu0 0.0
        %414 = vmatprep.subr.mxu0 0.0
        %415 = vmatpush2.msra.mxu0 0.0
        %416 = vmatprep.subr.mxu0 0.0
        %417 = vmatpush2.msra.mxu0 0.0
        %418 = vmatprep.subr.mxu0 0.0
        %419 = vmatpush2.msra.mxu0 0.0
        %420 = vmatprep.subr.mxu0 0.0
        %421 = vmatpush2.msra.mxu0 0.0
        %422 = vmatprep.subr.mxu0 0.0
        %423 = vmatpush2.msra.mxu0 0.0
        %424 = vmatprep.subr.mxu0 0.0
        %425 = vmatpush2.msra.mxu0 0.0
        %426 = vmatprep.subr.mxu0 0.0
        %427 = vmatpush2.msra.mxu0 0.0
        %428 = vmatprep.subr.mxu0 0.0
        %429 = vmatpush2.msra.mxu0 0.0
        %430 = vmatprep.subr.mxu0 0.0
        %431 = vmatpush2.msra.mxu0 0.0
        %432 = vmatprep.subr.mxu0 0.0
        %433 = vmatpush2.msra.mxu0 0.0
        %434 = vmatprep.subr.mxu0 0.0
        %435 = vmatpush2.msra.mxu0 0.0
        %436 = vmatprep.mubr.f32.mxu0 0.0
        %437 = vmatmul.mubr.f32.gmra.mxu0 %v367
        %v438 = vpop.f32.mrf.mxu0
        %v439 = vadd.f32 0.0, %v438
        %v440 = vpop.f32.mrf.mxu0
        %441 = vmatprep.mubr.f32.mxu0 0.0
        %442 = vmatmul.mubr.f32.gmra.mxu0 %v370
        %v443 = vpop.f32.mrf.mxu0
        %v444 = vadd.f32 0.0, %v443
        %v445 = vpop.f32.mrf.mxu0
        %446 = vdwg.mxu0
        %v448 = vsel %vm365, %v347, 0
        %v451 = vsel %vm365, %v348, 0
        %453 = vmatprep.subr.mxu0 0.0
        %454 = vmatpush1.msra.mxu0 0.0
        %455 = vmatprep.subr.mxu0 0.0
        %456 = vmatpush1.msra.mxu0 0.0
        %457 = vmatprep.subr.mxu0 0.0
        %458 = vmatpush1.msra.mxu0 0.0
        %459 = vmatprep.subr.mxu0 0.0
        %460 = vmatpush1.msra.mxu0 0.0
        %461 = vmatprep.subr.mxu0 0.0
        %462 = vmatpush1.msra.mxu0 0.0
        %463 = vmatprep.subr.mxu0 0.0
        %464 = vmatpush1.msra.mxu0 0.0
        %465 = vmatprep.subr.mxu0 0.0
        %466 = vmatpush1.msra.mxu0 0.0
        %467 = vmatprep.subr.mxu0 0.0
        %468 = vmatpush1.msra.mxu0 0.0
        %469 = vmatprep.subr.mxu0 0.0
        %470 = vmatpush1.msra.mxu0 0.0
        %471 = vmatprep.subr.mxu0 0.0
        %472 = vmatpush1.msra.mxu0 0.0
        %473 = vmatprep.subr.mxu0 0.0
        %474 = vmatpush1.msra.mxu0 0.0
        %475 = vmatprep.subr.mxu0 0.0
        %476 = vmatpush1.msra.mxu0 0.0
        %477 = vmatprep.subr.mxu0 0.0
        %478 = vmatpush1.msra.mxu0 0.0
        %479 = vmatprep.subr.mxu0 0.0
        %480 = vmatpush1.msra.mxu0 0.0
        %481 = vmatprep.subr.mxu0 0.0
        %482 = vmatpush1.msra.mxu0 %v320
        %483 = vmatprep.subr.mxu0 0.0
        %484 = vmatpush1.msra.mxu0 %v319
        %485 = vmatprep.subr.mxu0 0.0
        %486 = vmatpush2.msra.mxu0 0.0
        %487 = vmatprep.subr.mxu0 0.0
        %488 = vmatpush2.msra.mxu0 0.0
        %489 = vmatprep.subr.mxu0 0.0
        %490 = vmatpush2.msra.mxu0 0.0
        %491 = vmatprep.subr.mxu0 0.0
        %492 = vmatpush2.msra.mxu0 0.0
        %493 = vmatprep.subr.mxu0 0.0
        %494 = vmatpush2.msra.mxu0 0.0
        %495 = vmatprep.subr.mxu0 0.0
        %496 = vmatpush2.msra.mxu0 0.0
        %497 = vmatprep.subr.mxu0 0.0
        %498 = vmatpush2.msra.mxu0 0.0
        %499 = vmatprep.subr.mxu0 0.0
        %500 = vmatpush2.msra.mxu0 0.0
        %501 = vmatprep.subr.mxu0 0.0
        %502 = vmatpush2.msra.mxu0 0.0
        %503 = vmatprep.subr.mxu0 0.0
        %504 = vmatpush2.msra.mxu0 0.0
        %505 = vmatprep.subr.mxu0 0.0
        %506 = vmatpush2.msra.mxu0 0.0
        %507 = vmatprep.subr.mxu0 0.0
        %508 = vmatpush2.msra.mxu0 0.0
        %509 = vmatprep.subr.mxu0 0.0
        %510 = vmatpush2.msra.mxu0 0.0
        %511 = vmatprep.subr.mxu0 0.0
        %512 = vmatpush2.msra.mxu0 0.0
        %513 = vmatprep.subr.mxu0 0.0
        %514 = vmatpush2.msra.mxu0 0.0
        %515 = vmatprep.subr.mxu0 0.0
        %516 = vmatpush2.msra.mxu0 0.0
        %517 = vmatprep.mubr.f32.mxu0 0.0
        %518 = vmatmul.mubr.f32.gmra.mxu0 %v448
        %v519 = vpop.f32.mrf.mxu0
        %v520 = vadd.f32 0.0, %v519
        %v521 = vpop.f32.mrf.mxu0
        %522 = vmatprep.mubr.f32.mxu0 0.0
        %523 = vmatmul.mubr.f32.gmra.mxu0 %v451
        %v524 = vpop.f32.mrf.mxu0
        %v525 = vadd.f32 0.0, %v524
        %v526 = vpop.f32.mrf.mxu0
        %527 = vdwg.mxu0
        %v529 = vsel %vm365, %v349, 0
        %v532 = vsel %vm365, %v350, 0
        %534 = vmatprep.subr.mxu0 0.0
        %535 = vmatpush1.msra.mxu0 0.0
        %536 = vmatprep.subr.mxu0 0.0
        %537 = vmatpush1.msra.mxu0 0.0
        %538 = vmatprep.subr.mxu0 0.0
        %539 = vmatpush1.msra.mxu0 0.0
        %540 = vmatprep.subr.mxu0 0.0
        %541 = vmatpush1.msra.mxu0 0.0
        %542 = vmatprep.subr.mxu0 0.0
        %543 = vmatpush1.msra.mxu0 0.0
        %544 = vmatprep.subr.mxu0 0.0
        %545 = vmatpush1.msra.mxu0 0.0
        %546 = vmatprep.subr.mxu0 0.0
        %547 = vmatpush1.msra.mxu0 0.0
        %548 = vmatprep.subr.mxu0 0.0
        %549 = vmatpush1.msra.mxu0 0.0
        %550 = vmatprep.subr.mxu0 0.0
        %551 = vmatpush1.msra.mxu0 0.0
        %552 = vmatprep.subr.mxu0 0.0
        %553 = vmatpush1.msra.mxu0 0.0
        %554 = vmatprep.subr.mxu0 0.0
        %555 = vmatpush1.msra.mxu0 0.0
        %556 = vmatprep.subr.mxu0 0.0
        %557 = vmatpush1.msra.mxu0 0.0
        %558 = vmatprep.subr.mxu0 0.0
        %559 = vmatpush1.msra.mxu0 0.0
        %560 = vmatprep.subr.mxu0 0.0
        %561 = vmatpush1.msra.mxu0 0.0
        %562 = vmatprep.subr.mxu0 0.0
        %563 = vmatpush1.msra.mxu0 %v322
        %564 = vmatprep.subr.mxu0 0.0
        %565 = vmatpush1.msra.mxu0 %v321
        %566 = vmatprep.subr.mxu0 0.0
        %567 = vmatpush2.msra.mxu0 0.0
        %568 = vmatprep.subr.mxu0 0.0
        %569 = vmatpush2.msra.mxu0 0.0
        %570 = vmatprep.subr.mxu0 0.0
        %571 = vmatpush2.msra.mxu0 0.0
        %572 = vmatprep.subr.mxu0 0.0
        %573 = vmatpush2.msra.mxu0 0.0
        %574 = vmatprep.subr.mxu0 0.0
        %575 = vmatpush2.msra.mxu0 0.0
        %576 = vmatprep.subr.mxu0 0.0
        %577 = vmatpush2.msra.mxu0 0.0
        %578 = vmatprep.subr.mxu0 0.0
        %579 = vmatpush2.msra.mxu0 0.0
        %580 = vmatprep.subr.mxu0 0.0
        %581 = vmatpush2.msra.mxu0 0.0
        %582 = vmatprep.subr.mxu0 0.0
        %583 = vmatpush2.msra.mxu0 0.0
        %584 = vmatprep.subr.mxu0 0.0
        %585 = vmatpush2.msra.mxu0 0.0
        %586 = vmatprep.subr.mxu0 0.0
        %587 = vmatpush2.msra.mxu0 0.0
        %588 = vmatprep.subr.mxu0 0.0
        %589 = vmatpush2.msra.mxu0 0.0
        %590 = vmatprep.subr.mxu0 0.0
        %591 = vmatpush2.msra.mxu0 0.0
        %592 = vmatprep.subr.mxu0 0.0
        %593 = vmatpush2.msra.mxu0 0.0
        %594 = vmatprep.subr.mxu0 0.0
        %595 = vmatpush2.msra.mxu0 0.0
        %596 = vmatprep.subr.mxu0 0.0
        %597 = vmatpush2.msra.mxu0 0.0
        %598 = vmatprep.mubr.f32.mxu0 0.0
        %599 = vmatmul.mubr.f32.gmra.mxu0 %v529
        %v600 = vpop.f32.mrf.mxu0
        %v601 = vadd.f32 0.0, %v600
        %v602 = vpop.f32.mrf.mxu0
        %603 = vmatprep.mubr.f32.mxu0 0.0
        %604 = vmatmul.mubr.f32.gmra.mxu0 %v532
        %v605 = vpop.f32.mrf.mxu0
        %v606 = vadd.f32 0.0, %v605
        %v607 = vpop.f32.mrf.mxu0
        %608 = vdwg.mxu0
        %v610 = vsel %vm365, %v351, 0
        %v613 = vsel %vm365, %v352, 0
        %615 = vmatprep.subr.mxu0 0.0
        %616 = vmatpush1.msra.mxu0 0.0
        %617 = vmatprep.subr.mxu0 0.0
        %618 = vmatpush1.msra.mxu0 0.0
        %619 = vmatprep.subr.mxu0 0.0
        %620 = vmatpush1.msra.mxu0 0.0
        %621 = vmatprep.subr.mxu0 0.0
        %622 = vmatpush1.msra.mxu0 0.0
        %623 = vmatprep.subr.mxu0 0.0
        %624 = vmatpush1.msra.mxu0 0.0
        %625 = vmatprep.subr.mxu0 0.0
        %626 = vmatpush1.msra.mxu0 0.0
        %627 = vmatprep.subr.mxu0 0.0
        %628 = vmatpush1.msra.mxu0 0.0
        %629 = vmatprep.subr.mxu0 0.0
        %630 = vmatpush1.msra.mxu0 0.0
        %631 = vmatprep.subr.mxu0 0.0
        %632 = vmatpush1.msra.mxu0 0.0
        %633 = vmatprep.subr.mxu0 0.0
        %634 = vmatpush1.msra.mxu0 0.0
        %635 = vmatprep.subr.mxu0 0.0
        %636 = vmatpush1.msra.mxu0 0.0
        %637 = vmatprep.subr.mxu0 0.0
        %638 = vmatpush1.msra.mxu0 0.0
        %639 = vmatprep.subr.mxu0 0.0
        %640 = vmatpush1.msra.mxu0 0.0
        %641 = vmatprep.subr.mxu0 0.0
        %642 = vmatpush1.msra.mxu0 0.0
        %643 = vmatprep.subr.mxu0 0.0
        %644 = vmatpush1.msra.mxu0 %v324
        %645 = vmatprep.subr.mxu0 0.0
        %646 = vmatpush1.msra.mxu0 %v323
        %647 = vmatprep.subr.mxu0 0.0
        %648 = vmatpush2.msra.mxu0 0.0
        %649 = vmatprep.subr.mxu0 0.0
        %650 = vmatpush2.msra.mxu0 0.0
        %651 = vmatprep.subr.mxu0 0.0
        %652 = vmatpush2.msra.mxu0 0.0
        %653 = vmatprep.subr.mxu0 0.0
        %654 = vmatpush2.msra.mxu0 0.0
        %655 = vmatprep.subr.mxu0 0.0
        %656 = vmatpush2.msra.mxu0 0.0
        %657 = vmatprep.subr.mxu0 0.0
        %658 = vmatpush2.msra.mxu0 0.0
        %659 = vmatprep.subr.mxu0 0.0
        %660 = vmatpush2.msra.mxu0 0.0
        %661 = vmatprep.subr.mxu0 0.0
        %662 = vmatpush2.msra.mxu0 0.0
        %663 = vmatprep.subr.mxu0 0.0
        %664 = vmatpush2.msra.mxu0 0.0
        %665 = vmatprep.subr.mxu0 0.0
        %666 = vmatpush2.msra.mxu0 0.0
        %667 = vmatprep.subr.mxu0 0.0
        %668 = vmatpush2.msra.mxu0 0.0
        %669 = vmatprep.subr.mxu0 0.0
        %670 = vmatpush2.msra.mxu0 0.0
        %671 = vmatprep.subr.mxu0 0.0
        %672 = vmatpush2.msra.mxu0 0.0
        %673 = vmatprep.subr.mxu0 0.0
        %674 = vmatpush2.msra.mxu0 0.0
        %675 = vmatprep.subr.mxu0 0.0
        %676 = vmatpush2.msra.mxu0 0.0
        %677 = vmatprep.subr.mxu0 0.0
        %678 = vmatpush2.msra.mxu0 0.0
        %679 = vmatprep.mubr.f32.mxu0 0.0
        %680 = vmatmul.mubr.f32.gmra.mxu0 %v610
        %v681 = vpop.f32.mrf.mxu0
        %v682 = vadd.f32 0.0, %v681
        %v683 = vpop.f32.mrf.mxu0
        %684 = vmatprep.mubr.f32.mxu0 0.0
        %685 = vmatmul.mubr.f32.gmra.mxu0 %v613
        %v686 = vpop.f32.mrf.mxu0
        %v687 = vadd.f32 0.0, %v686
        %v688 = vpop.f32.mrf.mxu0
        %689 = vdwg.mxu0
        %v690 = vadd.f32 %v353, %v439
        %v691 = vadd.f32 %v354, %v444
        %v692 = vadd.f32 %v355, %v520
        %v693 = vadd.f32 %v356, %v525
        %v694 = vadd.f32 %v357, %v601
        %v695 = vadd.f32 %v358, %v606
        %v696 = vadd.f32 %v359, %v682
        %v697 = vadd.f32 %v360, %v687
        %s698 = scalar_lea.vmem [#allocation8], 32
        %v699 = vld [vmem:[%s698] sm:$0xff]
        %v700 = vld [vmem:[%s698 + $0x8] sm:$0xff]
        %v701 = vld [vmem:[%s698 + $0x10] sm:$0xff]
        %v702 = vld [vmem:[%s698 + $0x18] sm:$0xff]
        %vm703 = vcmask 261120
        %v705 = vsel %vm703, %v690, 0
        %v708 = vsel %vm703, %v691, 0
        %v711 = vsel %vm703, %v692, 0
        %v714 = vsel %vm703, %v693, 0
        %v717 = vsel %vm703, %v694, 0
        %v720 = vsel %vm703, %v695, 0
        %v723 = vsel %vm703, %v696, 0
        %v726 = vsel %vm703, %v697, 0
        %728 = vmatprep.subr.mxu0 0.0
        %729 = vmatpush1.msra.mxu0 0.0
        %730 = vmatprep.subr.mxu0 0.0
        %731 = vmatpush1.msra.mxu0 0.0
        %732 = vmatprep.subr.mxu0 0.0
        %733 = vmatpush1.msra.mxu0 0.0
        %734 = vmatprep.subr.mxu0 0.0
        %735 = vmatpush1.msra.mxu0 0.0
        %736 = vmatprep.subr.mxu0 0.0
        %737 = vmatpush1.msra.mxu0 0.0
        %738 = vmatprep.subr.mxu0 0.0
        %739 = vmatpush1.msra.mxu0 0.0
        %740 = vmatprep.subr.mxu0 0.0
        %741 = vmatpush1.msra.mxu0 0.0
        %742 = vmatprep.subr.mxu0 0.0
        %743 = vmatpush1.msra.mxu0 0.0
        %744 = vmatprep.subr.mxu0 0.0
        %745 = vmatpush1.msra.mxu0 0.0
        %746 = vmatprep.subr.mxu0 0.0
        %747 = vmatpush1.msra.mxu0 0.0
        %748 = vmatprep.subr.mxu0 0.0
        %749 = vmatpush1.msra.mxu0 0.0
        %750 = vmatprep.subr.mxu0 0.0
        %751 = vmatpush1.msra.mxu0 0.0
        %752 = vmatprep.subr.mxu0 0.0
        %753 = vmatpush1.msra.mxu0 %v702
        %754 = vmatprep.subr.mxu0 0.0
        %755 = vmatpush1.msra.mxu0 %v701
        %756 = vmatprep.subr.mxu0 0.0
        %757 = vmatpush1.msra.mxu0 %v700
        %758 = vmatprep.subr.mxu0 0.0
        %759 = vmatpush1.msra.mxu0 %v699
        %760 = vmatprep.subr.mxu0 0.0
        %761 = vmatpush2.msra.mxu0 0.0
        %762 = vmatprep.subr.mxu0 0.0
        %763 = vmatpush2.msra.mxu0 0.0
        %764 = vmatprep.subr.mxu0 0.0
        %765 = vmatpush2.msra.mxu0 0.0
        %766 = vmatprep.subr.mxu0 0.0
        %767 = vmatpush2.msra.mxu0 0.0
        %768 = vmatprep.subr.mxu0 0.0
        %769 = vmatpush2.msra.mxu0 0.0
        %770 = vmatprep.subr.mxu0 0.0
        %771 = vmatpush2.msra.mxu0 0.0
        %772 = vmatprep.subr.mxu0 0.0
        %773 = vmatpush2.msra.mxu0 0.0
        %774 = vmatprep.subr.mxu0 0.0
        %775 = vmatpush2.msra.mxu0 0.0
        %776 = vmatprep.subr.mxu0 0.0
        %777 = vmatpush2.msra.mxu0 0.0
        %778 = vmatprep.subr.mxu0 0.0
        %779 = vmatpush2.msra.mxu0 0.0
        %780 = vmatprep.subr.mxu0 0.0
        %781 = vmatpush2.msra.mxu0 0.0
        %782 = vmatprep.subr.mxu0 0.0
        %783 = vmatpush2.msra.mxu0 0.0
        %784 = vmatprep.subr.mxu0 0.0
        %785 = vmatpush2.msra.mxu0 0.0
        %786 = vmatprep.subr.mxu0 0.0
        %787 = vmatpush2.msra.mxu0 0.0
        %788 = vmatprep.subr.mxu0 0.0
        %789 = vmatpush2.msra.mxu0 0.0
        %790 = vmatprep.subr.mxu0 0.0
        %791 = vmatpush2.msra.mxu0 0.0
        %792 = vmatprep.mubr.f32.mxu0 0.0
        %793 = vmatmul.mubr.f32.gmra.mxu0 %v705
        %v794 = vpop.f32.mrf.mxu0
        %v795 = vadd.f32 0.0, %v794
        %v796 = vpop.f32.mrf.mxu0
        %797 = vmatprep.mubr.f32.mxu0 0.0
        %798 = vmatmul.mubr.f32.gmra.mxu0 %v708
        %v799 = vpop.f32.mrf.mxu0
        %v800 = vadd.f32 0.0, %v799
        %v801 = vpop.f32.mrf.mxu0
        %802 = vmatprep.mubr.f32.mxu0 0.0
        %803 = vmatmul.mubr.f32.gmra.mxu0 %v711
        %v804 = vpop.f32.mrf.mxu0
        %v805 = vadd.f32 0.0, %v804
        %v806 = vpop.f32.mrf.mxu0
        %807 = vmatprep.mubr.f32.mxu0 0.0
        %808 = vmatmul.mubr.f32.gmra.mxu0 %v714
        %v809 = vpop.f32.mrf.mxu0
        %v810 = vadd.f32 0.0, %v809
        %v811 = vpop.f32.mrf.mxu0
        %812 = vmatprep.mubr.f32.mxu0 0.0
        %813 = vmatmul.mubr.f32.gmra.mxu0 %v717
        %v814 = vpop.f32.mrf.mxu0
        %v815 = vadd.f32 0.0, %v814
        %v816 = vpop.f32.mrf.mxu0
        %817 = vmatprep.mubr.f32.mxu0 0.0
        %818 = vmatmul.mubr.f32.gmra.mxu0 %v720
        %v819 = vpop.f32.mrf.mxu0
        %v820 = vadd.f32 0.0, %v819
        %v821 = vpop.f32.mrf.mxu0
        %822 = vmatprep.mubr.f32.mxu0 0.0
        %823 = vmatmul.mubr.f32.gmra.mxu0 %v723
        %v824 = vpop.f32.mrf.mxu0
        %v825 = vadd.f32 0.0, %v824
        %v826 = vpop.f32.mrf.mxu0
        %827 = vmatprep.mubr.f32.mxu0 0.0
        %828 = vmatmul.mubr.f32.gmra.mxu0 %v726
        %v829 = vpop.f32.mrf.mxu0
        %v830 = vadd.f32 0.0, %v829
        %v831 = vpop.f32.mrf.mxu0
        %832 = vdwg.mxu0
        %v834 = vsel %vm703, %v317, 0
        %v837 = vsel %vm703, %v318, 0
        %v840 = vsel %vm703, %v319, 0
        %v843 = vsel %vm703, %v320, 0
        %v846 = vsel %vm703, %v321, 0
        %v849 = vsel %vm703, %v322, 0
        %v852 = vsel %vm703, %v323, 0
        %v855 = vsel %vm703, %v324, 0
        %857 = vmatprep.subr.mxu0 0.0
        %858 = vmatpush1.msra.mxu0 0.0
        %859 = vmatprep.subr.mxu0 0.0
        %860 = vmatpush1.msra.mxu0 0.0
        %861 = vmatprep.subr.mxu0 0.0
        %862 = vmatpush1.msra.mxu0 0.0
        %863 = vmatprep.subr.mxu0 0.0
        %864 = vmatpush1.msra.mxu0 0.0
        %865 = vmatprep.subr.mxu0 0.0
        %866 = vmatpush1.msra.mxu0 0.0
        %867 = vmatprep.subr.mxu0 0.0
        %868 = vmatpush1.msra.mxu0 0.0
        %869 = vmatprep.subr.mxu0 0.0
        %870 = vmatpush1.msra.mxu0 0.0
        %871 = vmatprep.subr.mxu0 0.0
        %872 = vmatpush1.msra.mxu0 0.0
        %873 = vmatprep.subr.mxu0 0.0
        %874 = vmatpush1.msra.mxu0 0.0
        %875 = vmatprep.subr.mxu0 0.0
        %876 = vmatpush1.msra.mxu0 0.0
        %877 = vmatprep.subr.mxu0 0.0
        %878 = vmatpush1.msra.mxu0 0.0
        %879 = vmatprep.subr.mxu0 0.0
        %880 = vmatpush1.msra.mxu0 0.0
        %881 = vmatprep.subr.mxu0 0.0
        %882 = vmatpush1.msra.mxu0 %v364
        %883 = vmatprep.subr.mxu0 0.0
        %884 = vmatpush1.msra.mxu0 %v363
        %885 = vmatprep.subr.mxu0 0.0
        %886 = vmatpush1.msra.mxu0 %v362
        %887 = vmatprep.subr.mxu0 0.0
        %888 = vmatpush1.msra.mxu0 %v361
        %889 = vmatprep.subr.mxu0 0.0
        %890 = vmatpush2.msra.mxu0 0.0
        %891 = vmatprep.subr.mxu0 0.0
        %892 = vmatpush2.msra.mxu0 0.0
        %893 = vmatprep.subr.mxu0 0.0
        %894 = vmatpush2.msra.mxu0 0.0
        %895 = vmatprep.subr.mxu0 0.0
        %896 = vmatpush2.msra.mxu0 0.0
        %897 = vmatprep.subr.mxu0 0.0
        %898 = vmatpush2.msra.mxu0 0.0
        %899 = vmatprep.subr.mxu0 0.0
        %900 = vmatpush2.msra.mxu0 0.0
        %901 = vmatprep.subr.mxu0 0.0
        %902 = vmatpush2.msra.mxu0 0.0
        %903 = vmatprep.subr.mxu0 0.0
        %904 = vmatpush2.msra.mxu0 0.0
        %905 = vmatprep.subr.mxu0 0.0
        %906 = vmatpush2.msra.mxu0 0.0
        %907 = vmatprep.subr.mxu0 0.0
        %908 = vmatpush2.msra.mxu0 0.0
        %909 = vmatprep.subr.mxu0 0.0
        %910 = vmatpush2.msra.mxu0 0.0
        %911 = vmatprep.subr.mxu0 0.0
        %912 = vmatpush2.msra.mxu0 0.0
        %913 = vmatprep.subr.mxu0 0.0
        %914 = vmatpush2.msra.mxu0 0.0
        %915 = vmatprep.subr.mxu0 0.0
        %916 = vmatpush2.msra.mxu0 0.0
        %917 = vmatprep.subr.mxu0 0.0
        %918 = vmatpush2.msra.mxu0 0.0
        %919 = vmatprep.subr.mxu0 0.0
        %920 = vmatpush2.msra.mxu0 0.0
        %921 = vmatprep.mubr.f32.mxu0 0.0
        %922 = vmatmul.mubr.f32.gmra.mxu0 %v834
        %v923 = vpop.f32.mrf.mxu0
        %v924 = vadd.f32 %v795, %v923
        %v925 = vpop.f32.mrf.mxu0
        %926 = vmatprep.mubr.f32.mxu0 0.0
        %927 = vmatmul.mubr.f32.gmra.mxu0 %v837
        %v928 = vpop.f32.mrf.mxu0
        %v929 = vadd.f32 %v800, %v928
        %v930 = vpop.f32.mrf.mxu0
        %931 = vmatprep.mubr.f32.mxu0 0.0
        %932 = vmatmul.mubr.f32.gmra.mxu0 %v840
        %v933 = vpop.f32.mrf.mxu0
        %v934 = vadd.f32 %v805, %v933
        %v935 = vpop.f32.mrf.mxu0
        %936 = vmatprep.mubr.f32.mxu0 0.0
        %937 = vmatmul.mubr.f32.gmra.mxu0 %v843
        %v938 = vpop.f32.mrf.mxu0
        %v939 = vadd.f32 %v810, %v938
        %v940 = vpop.f32.mrf.mxu0
        %941 = vmatprep.mubr.f32.mxu0 0.0
        %942 = vmatmul.mubr.f32.gmra.mxu0 %v846
        %v943 = vpop.f32.mrf.mxu0
        %v944 = vadd.f32 %v815, %v943
        %v945 = vpop.f32.mrf.mxu0
        %946 = vmatprep.mubr.f32.mxu0 0.0
        %947 = vmatmul.mubr.f32.gmra.mxu0 %v849
        %v948 = vpop.f32.mrf.mxu0
        %v949 = vadd.f32 %v820, %v948
        %v950 = vpop.f32.mrf.mxu0
        %951 = vmatprep.mubr.f32.mxu0 0.0
        %952 = vmatmul.mubr.f32.gmra.mxu0 %v852
        %v953 = vpop.f32.mrf.mxu0
        %v954 = vadd.f32 %v825, %v953
        %v955 = vpop.f32.mrf.mxu0
        %956 = vmatprep.mubr.f32.mxu0 0.0
        %957 = vmatmul.mubr.f32.gmra.mxu0 %v855
        %v958 = vpop.f32.mrf.mxu0
        %v959 = vadd.f32 %v830, %v958
        %v960 = vpop.f32.mrf.mxu0
        %961 = vdwg.mxu0
        %962 = vmatprep.subr.mxu0 0.0
        %963 = vmatpush1.msra.mxu0 0.0
        %964 = vmatprep.subr.mxu0 0.0
        %965 = vmatpush1.msra.mxu0 0.0
        %966 = vmatprep.subr.mxu0 0.0
        %967 = vmatpush1.msra.mxu0 0.0
        %968 = vmatprep.subr.mxu0 0.0
        %969 = vmatpush1.msra.mxu0 0.0
        %970 = vmatprep.subr.mxu0 0.0
        %971 = vmatpush1.msra.mxu0 0.0
        %972 = vmatprep.subr.mxu0 0.0
        %973 = vmatpush1.msra.mxu0 0.0
        %974 = vmatprep.subr.mxu0 0.0
        %975 = vmatpush1.msra.mxu0 0.0
        %976 = vmatprep.subr.mxu0 0.0
        %977 = vmatpush1.msra.mxu0 0.0
        %978 = vmatprep.subr.mxu0 0.0
        %979 = vmatpush1.msra.mxu0 0.0
        %980 = vmatprep.subr.mxu0 0.0
        %981 = vmatpush1.msra.mxu0 0.0
        %982 = vmatprep.subr.mxu0 0.0
        %983 = vmatpush1.msra.mxu0 0.0
        %984 = vmatprep.subr.mxu0 0.0
        %985 = vmatpush1.msra.mxu0 0.0
        %986 = vmatprep.subr.mxu0 0.0
        %987 = vmatpush1.msra.mxu0 0.0
        %988 = vmatprep.subr.mxu0 0.0
        %989 = vmatpush1.msra.mxu0 0.0
        %990 = vmatprep.subr.mxu0 0.0
        %991 = vmatpush1.msra.mxu0 %v691
        %992 = vmatprep.subr.mxu0 0.0
        %993 = vmatpush1.msra.mxu0 %v690
        %994 = vmatprep.subr.mxu0 0.0
        %995 = vmatpush2.msra.mxu0 0.0
        %996 = vmatprep.subr.mxu0 0.0
        %997 = vmatpush2.msra.mxu0 0.0
        %998 = vmatprep.subr.mxu0 0.0
        %999 = vmatpush2.msra.mxu0 0.0
        %1000 = vmatprep.subr.mxu0 0.0
        %1001 = vmatpush2.msra.mxu0 0.0
        %1002 = vmatprep.subr.mxu0 0.0
        %1003 = vmatpush2.msra.mxu0 0.0
        %1004 = vmatprep.subr.mxu0 0.0
        %1005 = vmatpush2.msra.mxu0 0.0
        %1006 = vmatprep.subr.mxu0 0.0
        %1007 = vmatpush2.msra.mxu0 0.0
        %1008 = vmatprep.subr.mxu0 0.0
        %1009 = vmatpush2.msra.mxu0 0.0
        %1010 = vmatprep.subr.mxu0 0.0
        %1011 = vmatpush2.msra.mxu0 0.0
        %1012 = vmatprep.subr.mxu0 0.0
        %1013 = vmatpush2.msra.mxu0 0.0
        %1014 = vmatprep.subr.mxu0 0.0
        %1015 = vmatpush2.msra.mxu0 0.0
        %1016 = vmatprep.subr.mxu0 0.0
        %1017 = vmatpush2.msra.mxu0 0.0
        %1018 = vmatprep.subr.mxu0 0.0
        %1019 = vmatpush2.msra.mxu0 0.0
        %1020 = vmatprep.subr.mxu0 0.0
        %1021 = vmatpush2.msra.mxu0 0.0
        %1022 = vmatprep.subr.mxu0 0.0
        %1023 = vmatpush2.msra.mxu0 0.0
        %1024 = vmatprep.subr.mxu0 0.0
        %1025 = vmatpush2.msra.mxu0 0.0
        %1026 = vmatprep.mubr.f32.mxu0 0.0
        %1027 = vmatmul.mubr.f32.gmra.mxu0 %v367
        %v1028 = vpop.f32.mrf.mxu0
        %v1029 = vadd.f32 0.0, %v1028
        %v1030 = vpop.f32.mrf.mxu0
        %1031 = vmatprep.mubr.f32.mxu0 0.0
        %1032 = vmatmul.mubr.f32.gmra.mxu0 %v370
        %v1033 = vpop.f32.mrf.mxu0
        %v1034 = vadd.f32 0.0, %v1033
        %v1035 = vpop.f32.mrf.mxu0
        %1036 = vdwg.mxu0
        %1037 = vmatprep.subr.mxu0 0.0
        %1038 = vmatpush1.msra.mxu0 0.0
        %1039 = vmatprep.subr.mxu0 0.0
        %1040 = vmatpush1.msra.mxu0 0.0
        %1041 = vmatprep.subr.mxu0 0.0
        %1042 = vmatpush1.msra.mxu0 0.0
        %1043 = vmatprep.subr.mxu0 0.0
        %1044 = vmatpush1.msra.mxu0 0.0
        %1045 = vmatprep.subr.mxu0 0.0
        %1046 = vmatpush1.msra.mxu0 0.0
        %1047 = vmatprep.subr.mxu0 0.0
        %1048 = vmatpush1.msra.mxu0 0.0
        %1049 = vmatprep.subr.mxu0 0.0
        %1050 = vmatpush1.msra.mxu0 0.0
        %1051 = vmatprep.subr.mxu0 0.0
        %1052 = vmatpush1.msra.mxu0 0.0
        %1053 = vmatprep.subr.mxu0 0.0
        %1054 = vmatpush1.msra.mxu0 0.0
        %1055 = vmatprep.subr.mxu0 0.0
        %1056 = vmatpush1.msra.mxu0 0.0
        %1057 = vmatprep.subr.mxu0 0.0
        %1058 = vmatpush1.msra.mxu0 0.0
        %1059 = vmatprep.subr.mxu0 0.0
        %1060 = vmatpush1.msra.mxu0 0.0
        %1061 = vmatprep.subr.mxu0 0.0
        %1062 = vmatpush1.msra.mxu0 0.0
        %1063 = vmatprep.subr.mxu0 0.0
        %1064 = vmatpush1.msra.mxu0 0.0
        %1065 = vmatprep.subr.mxu0 0.0
        %1066 = vmatpush1.msra.mxu0 %v693
        %1067 = vmatprep.subr.mxu0 0.0
        %1068 = vmatpush1.msra.mxu0 %v692
        %1069 = vmatprep.subr.mxu0 0.0
        %1070 = vmatpush2.msra.mxu0 0.0
        %1071 = vmatprep.subr.mxu0 0.0
        %1072 = vmatpush2.msra.mxu0 0.0
        %1073 = vmatprep.subr.mxu0 0.0
        %1074 = vmatpush2.msra.mxu0 0.0
        %1075 = vmatprep.subr.mxu0 0.0
        %1076 = vmatpush2.msra.mxu0 0.0
        %1077 = vmatprep.subr.mxu0 0.0
        %1078 = vmatpush2.msra.mxu0 0.0
        %1079 = vmatprep.subr.mxu0 0.0
        %1080 = vmatpush2.msra.mxu0 0.0
        %1081 = vmatprep.subr.mxu0 0.0
        %1082 = vmatpush2.msra.mxu0 0.0
        %1083 = vmatprep.subr.mxu0 0.0
        %1084 = vmatpush2.msra.mxu0 0.0
        %1085 = vmatprep.subr.mxu0 0.0
        %1086 = vmatpush2.msra.mxu0 0.0
        %1087 = vmatprep.subr.mxu0 0.0
        %1088 = vmatpush2.msra.mxu0 0.0
        %1089 = vmatprep.subr.mxu0 0.0
        %1090 = vmatpush2.msra.mxu0 0.0
        %1091 = vmatprep.subr.mxu0 0.0
        %1092 = vmatpush2.msra.mxu0 0.0
        %1093 = vmatprep.subr.mxu0 0.0
        %1094 = vmatpush2.msra.mxu0 0.0
        %1095 = vmatprep.subr.mxu0 0.0
        %1096 = vmatpush2.msra.mxu0 0.0
        %1097 = vmatprep.subr.mxu0 0.0
        %1098 = vmatpush2.msra.mxu0 0.0
        %1099 = vmatprep.subr.mxu0 0.0
        %1100 = vmatpush2.msra.mxu0 0.0
        %1101 = vmatprep.mubr.f32.mxu0 0.0
        %1102 = vmatmul.mubr.f32.gmra.mxu0 %v448
        %v1103 = vpop.f32.mrf.mxu0
        %v1104 = vadd.f32 0.0, %v1103
        %v1105 = vpop.f32.mrf.mxu0
        %1106 = vmatprep.mubr.f32.mxu0 0.0
        %1107 = vmatmul.mubr.f32.gmra.mxu0 %v451
        %v1108 = vpop.f32.mrf.mxu0
        %v1109 = vadd.f32 0.0, %v1108
        %v1110 = vpop.f32.mrf.mxu0
        %1111 = vdwg.mxu0
        %1112 = vmatprep.subr.mxu0 0.0
        %1113 = vmatpush1.msra.mxu0 0.0
        %1114 = vmatprep.subr.mxu0 0.0
        %1115 = vmatpush1.msra.mxu0 0.0
        %1116 = vmatprep.subr.mxu0 0.0
        %1117 = vmatpush1.msra.mxu0 0.0
        %1118 = vmatprep.subr.mxu0 0.0
        %1119 = vmatpush1.msra.mxu0 0.0
        %1120 = vmatprep.subr.mxu0 0.0
        %1121 = vmatpush1.msra.mxu0 0.0
        %1122 = vmatprep.subr.mxu0 0.0
        %1123 = vmatpush1.msra.mxu0 0.0
        %1124 = vmatprep.subr.mxu0 0.0
        %1125 = vmatpush1.msra.mxu0 0.0
        %1126 = vmatprep.subr.mxu0 0.0
        %1127 = vmatpush1.msra.mxu0 0.0
        %1128 = vmatprep.subr.mxu0 0.0
        %1129 = vmatpush1.msra.mxu0 0.0
        %1130 = vmatprep.subr.mxu0 0.0
        %1131 = vmatpush1.msra.mxu0 0.0
        %1132 = vmatprep.subr.mxu0 0.0
        %1133 = vmatpush1.msra.mxu0 0.0
        %1134 = vmatprep.subr.mxu0 0.0
        %1135 = vmatpush1.msra.mxu0 0.0
        %1136 = vmatprep.subr.mxu0 0.0
        %1137 = vmatpush1.msra.mxu0 0.0
        %1138 = vmatprep.subr.mxu0 0.0
        %1139 = vmatpush1.msra.mxu0 0.0
        %1140 = vmatprep.subr.mxu0 0.0
        %1141 = vmatpush1.msra.mxu0 %v695
        %1142 = vmatprep.subr.mxu0 0.0
        %1143 = vmatpush1.msra.mxu0 %v694
        %1144 = vmatprep.subr.mxu0 0.0
        %1145 = vmatpush2.msra.mxu0 0.0
        %1146 = vmatprep.subr.mxu0 0.0
        %1147 = vmatpush2.msra.mxu0 0.0
        %1148 = vmatprep.subr.mxu0 0.0
        %1149 = vmatpush2.msra.mxu0 0.0
        %1150 = vmatprep.subr.mxu0 0.0
        %1151 = vmatpush2.msra.mxu0 0.0
        %1152 = vmatprep.subr.mxu0 0.0
        %1153 = vmatpush2.msra.mxu0 0.0
        %1154 = vmatprep.subr.mxu0 0.0
        %1155 = vmatpush2.msra.mxu0 0.0
        %1156 = vmatprep.subr.mxu0 0.0
        %1157 = vmatpush2.msra.mxu0 0.0
        %1158 = vmatprep.subr.mxu0 0.0
        %1159 = vmatpush2.msra.mxu0 0.0
        %1160 = vmatprep.subr.mxu0 0.0
        %1161 = vmatpush2.msra.mxu0 0.0
        %1162 = vmatprep.subr.mxu0 0.0
        %1163 = vmatpush2.msra.mxu0 0.0
        %1164 = vmatprep.subr.mxu0 0.0
        %1165 = vmatpush2.msra.mxu0 0.0
        %1166 = vmatprep.subr.mxu0 0.0
        %1167 = vmatpush2.msra.mxu0 0.0
        %1168 = vmatprep.subr.mxu0 0.0
        %1169 = vmatpush2.msra.mxu0 0.0
        %1170 = vmatprep.subr.mxu0 0.0
        %1171 = vmatpush2.msra.mxu0 0.0
        %1172 = vmatprep.subr.mxu0 0.0
        %1173 = vmatpush2.msra.mxu0 0.0
        %1174 = vmatprep.subr.mxu0 0.0
        %1175 = vmatpush2.msra.mxu0 0.0
        %1176 = vmatprep.mubr.f32.mxu0 0.0
        %1177 = vmatmul.mubr.f32.gmra.mxu0 %v529
        %v1178 = vpop.f32.mrf.mxu0
        %v1179 = vadd.f32 0.0, %v1178
        %v1180 = vpop.f32.mrf.mxu0
        %1181 = vmatprep.mubr.f32.mxu0 0.0
        %1182 = vmatmul.mubr.f32.gmra.mxu0 %v532
        %v1183 = vpop.f32.mrf.mxu0
        %v1184 = vadd.f32 0.0, %v1183
        %v1185 = vpop.f32.mrf.mxu0
        %1186 = vdwg.mxu0
        %1187 = vmatprep.subr.mxu0 0.0
        %1188 = vmatpush1.msra.mxu0 0.0
        %1189 = vmatprep.subr.mxu0 0.0
        %1190 = vmatpush1.msra.mxu0 0.0
        %1191 = vmatprep.subr.mxu0 0.0
        %1192 = vmatpush1.msra.mxu0 0.0
        %1193 = vmatprep.subr.mxu0 0.0
        %1194 = vmatpush1.msra.mxu0 0.0
        %1195 = vmatprep.subr.mxu0 0.0
        %1196 = vmatpush1.msra.mxu0 0.0
        %1197 = vmatprep.subr.mxu0 0.0
        %1198 = vmatpush1.msra.mxu0 0.0
        %1199 = vmatprep.subr.mxu0 0.0
        %1200 = vmatpush1.msra.mxu0 0.0
        %1201 = vmatprep.subr.mxu0 0.0
        %1202 = vmatpush1.msra.mxu0 0.0
        %1203 = vmatprep.subr.mxu0 0.0
        %1204 = vmatpush1.msra.mxu0 0.0
        %1205 = vmatprep.subr.mxu0 0.0
        %1206 = vmatpush1.msra.mxu0 0.0
        %1207 = vmatprep.subr.mxu0 0.0
        %1208 = vmatpush1.msra.mxu0 0.0
        %1209 = vmatprep.subr.mxu0 0.0
        %1210 = vmatpush1.msra.mxu0 0.0
        %1211 = vmatprep.subr.mxu0 0.0
        %1212 = vmatpush1.msra.mxu0 0.0
        %1213 = vmatprep.subr.mxu0 0.0
        %1214 = vmatpush1.msra.mxu0 0.0
        %1215 = vmatprep.subr.mxu0 0.0
        %1216 = vmatpush1.msra.mxu0 %v697
        %1217 = vmatprep.subr.mxu0 0.0
        %1218 = vmatpush1.msra.mxu0 %v696
        %1219 = vmatprep.subr.mxu0 0.0
        %1220 = vmatpush2.msra.mxu0 0.0
        %1221 = vmatprep.subr.mxu0 0.0
        %1222 = vmatpush2.msra.mxu0 0.0
        %1223 = vmatprep.subr.mxu0 0.0
        %1224 = vmatpush2.msra.mxu0 0.0
        %1225 = vmatprep.subr.mxu0 0.0
        %1226 = vmatpush2.msra.mxu0 0.0
        %1227 = vmatprep.subr.mxu0 0.0
        %1228 = vmatpush2.msra.mxu0 0.0
        %1229 = vmatprep.subr.mxu0 0.0
        %1230 = vmatpush2.msra.mxu0 0.0
        %1231 = vmatprep.subr.mxu0 0.0
        %1232 = vmatpush2.msra.mxu0 0.0
        %1233 = vmatprep.subr.mxu0 0.0
        %1234 = vmatpush2.msra.mxu0 0.0
        %1235 = vmatprep.subr.mxu0 0.0
        %1236 = vmatpush2.msra.mxu0 0.0
        %1237 = vmatprep.subr.mxu0 0.0
        %1238 = vmatpush2.msra.mxu0 0.0
        %1239 = vmatprep.subr.mxu0 0.0
        %1240 = vmatpush2.msra.mxu0 0.0
        %1241 = vmatprep.subr.mxu0 0.0
        %1242 = vmatpush2.msra.mxu0 0.0
        %1243 = vmatprep.subr.mxu0 0.0
        %1244 = vmatpush2.msra.mxu0 0.0
        %1245 = vmatprep.subr.mxu0 0.0
        %1246 = vmatpush2.msra.mxu0 0.0
        %1247 = vmatprep.subr.mxu0 0.0
        %1248 = vmatpush2.msra.mxu0 0.0
        %1249 = vmatprep.subr.mxu0 0.0
        %1250 = vmatpush2.msra.mxu0 0.0
        %1251 = vmatprep.mubr.f32.mxu0 0.0
        %1252 = vmatmul.mubr.f32.gmra.mxu0 %v610
        %v1253 = vpop.f32.mrf.mxu0
        %v1254 = vadd.f32 0.0, %v1253
        %v1255 = vpop.f32.mrf.mxu0
        %1256 = vmatprep.mubr.f32.mxu0 0.0
        %1257 = vmatmul.mubr.f32.gmra.mxu0 %v613
        %v1258 = vpop.f32.mrf.mxu0
        %v1259 = vadd.f32 0.0, %v1258
        %v1260 = vpop.f32.mrf.mxu0
        %1261 = vdwg.mxu0
        %v1262 = vadd.f32 %v353, %v1029
        %v1263 = vadd.f32 %v354, %v1034
        %v1264 = vadd.f32 %v355, %v1104
        %v1265 = vadd.f32 %v356, %v1109
        %v1266 = vadd.f32 %v357, %v1179
        %v1267 = vadd.f32 %v358, %v1184
        %v1268 = vadd.f32 %v359, %v1254
        %v1269 = vadd.f32 %v360, %v1259
        %s1270 = scalar_lea.vmem [#allocation8], 64
        %v1271 = vld [vmem:[%s1270] sm:$0xff]
        %v1272 = vld [vmem:[%s1270 + $0x8] sm:$0xff]
        %v1273 = vld [vmem:[%s1270 + $0x10] sm:$0xff]
        %v1274 = vld [vmem:[%s1270 + $0x18] sm:$0xff]
        %v1276 = vsel %vm703, %v1262, 0
        %v1279 = vsel %vm703, %v1263, 0
        %v1282 = vsel %vm703, %v1264, 0
        %v1285 = vsel %vm703, %v1265, 0
        %v1288 = vsel %vm703, %v1266, 0
        %v1291 = vsel %vm703, %v1267, 0
        %v1294 = vsel %vm703, %v1268, 0
        %v1297 = vsel %vm703, %v1269, 0
        %1299 = vmatprep.subr.mxu0 0.0
        %1300 = vmatpush1.msra.mxu0 0.0
        %1301 = vmatprep.subr.mxu0 0.0
        %1302 = vmatpush1.msra.mxu0 0.0
        %1303 = vmatprep.subr.mxu0 0.0
        %1304 = vmatpush1.msra.mxu0 0.0
        %1305 = vmatprep.subr.mxu0 0.0
        %1306 = vmatpush1.msra.mxu0 0.0
        %1307 = vmatprep.subr.mxu0 0.0
        %1308 = vmatpush1.msra.mxu0 0.0
        %1309 = vmatprep.subr.mxu0 0.0
        %1310 = vmatpush1.msra.mxu0 0.0
        %1311 = vmatprep.subr.mxu0 0.0
        %1312 = vmatpush1.msra.mxu0 0.0
        %1313 = vmatprep.subr.mxu0 0.0
        %1314 = vmatpush1.msra.mxu0 0.0
        %1315 = vmatprep.subr.mxu0 0.0
        %1316 = vmatpush1.msra.mxu0 0.0
        %1317 = vmatprep.subr.mxu0 0.0
        %1318 = vmatpush1.msra.mxu0 0.0
        %1319 = vmatprep.subr.mxu0 0.0
        %1320 = vmatpush1.msra.mxu0 0.0
        %1321 = vmatprep.subr.mxu0 0.0
        %1322 = vmatpush1.msra.mxu0 0.0
        %1323 = vmatprep.subr.mxu0 0.0
        %1324 = vmatpush1.msra.mxu0 %v1274
        %1325 = vmatprep.subr.mxu0 0.0
        %1326 = vmatpush1.msra.mxu0 %v1273
        %1327 = vmatprep.subr.mxu0 0.0
        %1328 = vmatpush1.msra.mxu0 %v1272
        %1329 = vmatprep.subr.mxu0 0.0
        %1330 = vmatpush1.msra.mxu0 %v1271
        %1331 = vmatprep.subr.mxu0 0.0
        %1332 = vmatpush2.msra.mxu0 0.0
        %1333 = vmatprep.subr.mxu0 0.0
        %1334 = vmatpush2.msra.mxu0 0.0
        %1335 = vmatprep.subr.mxu0 0.0
        %1336 = vmatpush2.msra.mxu0 0.0
        %1337 = vmatprep.subr.mxu0 0.0
        %1338 = vmatpush2.msra.mxu0 0.0
        %1339 = vmatprep.subr.mxu0 0.0
        %1340 = vmatpush2.msra.mxu0 0.0
        %1341 = vmatprep.subr.mxu0 0.0
        %1342 = vmatpush2.msra.mxu0 0.0
        %1343 = vmatprep.subr.mxu0 0.0
        %1344 = vmatpush2.msra.mxu0 0.0
        %1345 = vmatprep.subr.mxu0 0.0
        %1346 = vmatpush2.msra.mxu0 0.0
        %1347 = vmatprep.subr.mxu0 0.0
        %1348 = vmatpush2.msra.mxu0 0.0
        %1349 = vmatprep.subr.mxu0 0.0
        %1350 = vmatpush2.msra.mxu0 0.0
        %1351 = vmatprep.subr.mxu0 0.0
        %1352 = vmatpush2.msra.mxu0 0.0
        %1353 = vmatprep.subr.mxu0 0.0
        %1354 = vmatpush2.msra.mxu0 0.0
        %1355 = vmatprep.subr.mxu0 0.0
        %1356 = vmatpush2.msra.mxu0 0.0
        %1357 = vmatprep.subr.mxu0 0.0
        %1358 = vmatpush2.msra.mxu0 0.0
        %1359 = vmatprep.subr.mxu0 0.0
        %1360 = vmatpush2.msra.mxu0 0.0
        %1361 = vmatprep.subr.mxu0 0.0
        %1362 = vmatpush2.msra.mxu0 0.0
        %1363 = vmatprep.mubr.f32.mxu0 0.0
        %1364 = vmatmul.mubr.f32.gmra.mxu0 %v1276
        %v1365 = vpop.f32.mrf.mxu0
        %v1366 = vadd.f32 0.0, %v1365
        %v1367 = vpop.f32.mrf.mxu0
        %1368 = vmatprep.mubr.f32.mxu0 0.0
        %1369 = vmatmul.mubr.f32.gmra.mxu0 %v1279
        %v1370 = vpop.f32.mrf.mxu0
        %v1371 = vadd.f32 0.0, %v1370
        %v1372 = vpop.f32.mrf.mxu0
        %1373 = vmatprep.mubr.f32.mxu0 0.0
        %1374 = vmatmul.mubr.f32.gmra.mxu0 %v1282
        %v1375 = vpop.f32.mrf.mxu0
        %v1376 = vadd.f32 0.0, %v1375
        %v1377 = vpop.f32.mrf.mxu0
        %1378 = vmatprep.mubr.f32.mxu0 0.0
        %1379 = vmatmul.mubr.f32.gmra.mxu0 %v1285
        %v1380 = vpop.f32.mrf.mxu0
        %v1381 = vadd.f32 0.0, %v1380
        %v1382 = vpop.f32.mrf.mxu0
        %1383 = vmatprep.mubr.f32.mxu0 0.0
        %1384 = vmatmul.mubr.f32.gmra.mxu0 %v1288
        %v1385 = vpop.f32.mrf.mxu0
        %v1386 = vadd.f32 0.0, %v1385
        %v1387 = vpop.f32.mrf.mxu0
        %1388 = vmatprep.mubr.f32.mxu0 0.0
        %1389 = vmatmul.mubr.f32.gmra.mxu0 %v1291
        %v1390 = vpop.f32.mrf.mxu0
        %v1391 = vadd.f32 0.0, %v1390
        %v1392 = vpop.f32.mrf.mxu0
        %1393 = vmatprep.mubr.f32.mxu0 0.0
        %1394 = vmatmul.mubr.f32.gmra.mxu0 %v1294
        %v1395 = vpop.f32.mrf.mxu0
        %v1396 = vadd.f32 0.0, %v1395
        %v1397 = vpop.f32.mrf.mxu0
        %1398 = vmatprep.mubr.f32.mxu0 0.0
        %1399 = vmatmul.mubr.f32.gmra.mxu0 %v1297
        %v1400 = vpop.f32.mrf.mxu0
        %v1401 = vadd.f32 0.0, %v1400
        %v1402 = vpop.f32.mrf.mxu0
        %1403 = vdwg.mxu0
        %v1404 = vadd.f32 %v924, %v1366
        %v1405 = vadd.f32 %v929, %v1371
        %v1406 = vadd.f32 %v934, %v1376
        %v1407 = vadd.f32 %v939, %v1381
        %v1408 = vadd.f32 %v944, %v1386
        %v1409 = vadd.f32 %v949, %v1391
        %v1410 = vadd.f32 %v954, %v1396
        %v1411 = vadd.f32 %v959, %v1401
        %v1412 = vld [vmem:[%s4] sm:$0x1]
        %v1414 = vlaneseq
        %v1415 = vshrl.u32 %v1414, 7
        %v1416 = vsub.s32 0, %v1415
        %v1417 = vrot.slane %v1412, %v1416
        %v1419 = vadd.f32 %v1404, %v1417
        %v1420 = vadd.f32 %v1405, %v1417
        %v1421 = vadd.f32 %v1406, %v1417
        %v1422 = vadd.f32 %v1407, %v1417
        %v1423 = vadd.f32 %v1408, %v1417
        %v1424 = vadd.f32 %v1409, %v1417
        %v1425 = vadd.f32 %v1410, %v1417
        %v1426 = vadd.f32 %v1411, %v1417
        %1427 = vst [vmem:[%s313] sm:$0xff] %v1419
        %1428 = vst [vmem:[%s313 + $0x8] sm:$0xff] %v1420
        %1429 = vst [vmem:[%s313 + $0x10] sm:$0xff] %v1421
        %1430 = vst [vmem:[%s313 + $0x18] sm:$0xff] %v1422
        %1431 = vst [vmem:[%s313 + $0x20] sm:$0xff] %v1423
        %1432 = vst [vmem:[%s313 + $0x28] sm:$0xff] %v1424
        %1433 = vst [vmem:[%s313 + $0x30] sm:$0xff] %v1425
        %1434 = vst [vmem:[%s313 + $0x38] sm:$0xff] %v1426
        %s1435 = sand.u32 %s149, 1
        %s1436 = scalar_lea.sflag [#allocation4], %s1435
        %s1437 = sand.u32 %s149, 1
        %s1438 = smul.addr %s1437, 64
        %s1439 = scalar_lea.vmem [#allocation10], %s1438
        // Predicated region
        $region57: #{tpu_custom_call.1} parent=39 // pred_check
          %p1440 = pneg %p159
        $region58: #{tpu_custom_call.1} parent=39 // pred_check_branch
          %1442 = sbr.rel (%p1440) target = $region60
        $region59: #{tpu_custom_call.1} parent=39 // pred_region
          %s1443 = smul.u32 4, %s26
          %s1445 = ssub.s32 1024, 1024
          %1446 = vsyncadd %s1436, %s1445
          %s1447 = smul.addr %s1443, 2
          %s1448 = smul.addr %s1447, 128
          %s1449 = scalar_lea.hbm %s5, %s1448
          %s1450 = sshll.u32 %s1439, 4
          %s1451 = int_to_ptr.vmem [resolvable:$true] %s1450
          %1456 = dma.vmem_to_hbm [thread:$0]  %s1451, 1024, %s1449, %s1436, 128, 128, 8
        $region60: #{tpu_custom_call.1} parent=39 // pred_fallthru
          _
      $region40: #{tpu_custom_call.1} parent=5 // pred_fallthru
        _
      %p1457 = scmp.le.s32.totalorder 2, %s21
      // Predicated region
      $region61: #{tpu_custom_call.1} parent=5 // pred_check
        %p1458 = pneg %p1457
      $region62: #{tpu_custom_call.1} parent=5 // pred_check_branch
        %1460 = sbr.rel (%p1458) target = $region64
      $region63: #{tpu_custom_call.1} parent=5 // pred_region
        %s1461 = ssub.s32 %s21, 2
        // Predicated region
        $region65: #{tpu_custom_call.1} parent=63 // pred_check
          %p1462 = pneg %p165
        $region66: #{tpu_custom_call.1} parent=63 // pred_check_branch
          %1464 = sbr.rel (%p1462) target = $region68
        $region67: #{tpu_custom_call.1} parent=63 // pred_region
          %s1465 = sand.u32 %s150, 1
          %s1466 = scalar_lea.sflag [#allocation4], %s1465
          %s1467 = sand.u32 %s150, 1
          %s1468 = smul.addr %s1467, 64
          %s1469 = scalar_lea.vmem [#allocation10], %s1468
          %1470 = dma.done %s1466, 1024
        $region68: #{tpu_custom_call.1} parent=63 // pred_fallthru
          _
      $region64: #{tpu_custom_call.1} parent=5 // pred_fallthru
        _
    $region6: #{tpu_custom_call.1} parent=1 // loop_footer
      %s25 = sadd.s32 1, %s21
    $region7: #{tpu_custom_call.1} parent=1 // loop_footer_branch
      %20 = sbr.rel target = $region3
    $region8: #{tpu_custom_call.1} parent=1 // loop_exit
      _
    %1471 = vsyncpa [#allocation3], 1
    %s1472 = scalar_lea.sflag [#allocation3], 1
    %1473 = vsyncpa %s1472, 1
    %1474 = vsyncpa [#allocation6], 1
    %s1475 = scalar_lea.sflag [#allocation6], 1
    %1476 = vsyncpa %s1475, 1
    %1477 = vsyncpa [#allocation9], 1
    %1478 = vsyncpa [#allocation4], 1
    %s1479 = scalar_lea.sflag [#allocation4], 1
    %1480 = vsyncpa %s1479, 1

</llo_original>
